<compile_context>
chip_gen: v7x
topology: tpu7x:2x2x1
jax: 0.10.0
libtpu: 0.0.40
codegen_flags: <defaults>
</compile_context>

<pallas_src>
import math

import jax
import jax.numpy as jnp
from jax.experimental import pallas as pl
from jax.experimental.pallas import tpu as pltpu


def _round_up(n, m):
    return ((n + m - 1) // m) * m


# ----------------------------- Pallas kernel ------------------------------- #
def mlp_kernel(x_ref,
               w1_ref, b1_ref, w2_ref, b2_ref, w3_ref, b3_ref,
               w4_ref, b4_ref, w5_ref, b5_ref, w6_ref, b6_ref,
               o_ref):
    """Fused 6-layer MLP on one (features, TILE_B) batch tile."""

    def dense(h, w_ref, b_ref):
        # bf16 MXU matmul with f32 accumulation; f32 bias add on the VPU.
        z = jnp.dot(w_ref[...], h.astype(jnp.bfloat16),
                    preferred_element_type=jnp.float32)
        return z + b_ref[...]                        # (out_pad, 1) broadcasts over lanes

    h = x_ref[...]                                   # (in_pad, TILE_B) bf16
    h = jnp.maximum(dense(h, w1_ref, b1_ref), 0.0)   # layer1 + ReLU
    h = jnp.maximum(dense(h, w2_ref, b2_ref), 0.0)   # layer2 + ReLU
    h = jnp.maximum(dense(h, w3_ref, b3_ref), 0.0)   # layer3 + ReLU
    h = jnp.maximum(dense(h, w4_ref, b4_ref), 0.0)   # layer4 + ReLU
    h = jnp.maximum(dense(h, w5_ref, b5_ref), 0.0)   # layer5 + ReLU
    z = dense(h, w6_ref, b6_ref)                     # layer6
    o_ref[...] = jax.nn.sigmoid(z)                   # sigmoid head (row 0 is the real output)


# ------------------------------- Wrapper ------------------------------------ #
def mlp_forward(x, prepared_params, *, tile_b=512):
    """x: (B, input_size) f32; prepared_params: list of (W_bf16 (out_p,in_p), b_f32 (out_p,1))."""
    B, in_f = x.shape
    in_p = prepared_params[0][0].shape[1]
    out_p = prepared_params[-1][0].shape[0]

    # Lane tile: multiple of 128, clamped so tiny demo batches still use one step.
    tile_b = max(128, min(_round_up(tile_b, 128), _round_up(B, 128)))
    b_pad = _round_up(B, tile_b)
    grid = (b_pad // tile_b,)

    # Layout plumbing (plain JAX): pad features to in_p, pad batch to b_pad,
    # transpose, and pre-cast to bf16 (the MXU operand dtype) to halve input DMA.
    xt = jnp.zeros((in_p, b_pad), jnp.bfloat16).at[:in_f, :B].set(
        x.T.astype(jnp.bfloat16))

    flat_args = [xt]
    in_specs = [pl.BlockSpec((in_p, tile_b), lambda i: (0, i))]
    for w, b in prepared_params:
        flat_args.extend([w, b])
        in_specs.append(pl.BlockSpec(w.shape, lambda i: (0, 0)))   # weights VMEM-resident
        in_specs.append(pl.BlockSpec(b.shape, lambda i: (0, 0)))

    flops = 2 * b_pad * sum(int(w.shape[0]) * int(w.shape[1]) for w, _ in prepared_params)
    weight_bytes = sum(int(w.size) * w.dtype.itemsize + int(b.size) * b.dtype.itemsize
                       for w, b in prepared_params)
    bytes_accessed = int(xt.size) * xt.dtype.itemsize + out_p * b_pad * 4 + weight_bytes
    cost = pl.CostEstimate(flops=int(flops),
                           transcendentals=int(out_p * b_pad),
                           bytes_accessed=int(bytes_accessed))

    out_t = pl.pallas_call(
        mlp_kernel,
        out_shape=jax.ShapeDtypeStruct((out_p, b_pad), jnp.float32),
        grid=grid,
        in_specs=in_specs,
        out_specs=pl.BlockSpec((out_p, tile_b), lambda i: (0, i)),
        compiler_params=pltpu.CompilerParams(dimension_semantics=("parallel",)),
        cost_estimate=cost,
    )(*flat_args)

    # Row 0 holds the real (unpadded) output feature; drop padded batch columns.
    return out_t[0, :B][:, None]


# --------------------------- Parameter creation ----------------------------- #
def init_mlp_params(key, input_size=2):
    """PyTorch nn.Linear-style params: W (out, in), b (out,), U(-1/sqrt(fan_in), +1/sqrt(fan_in))."""
    sizes = [input_size, 50, 70, 150, 100, 50, 1]
    params = []
    for fan_in, fan_out in zip(sizes[:-1], sizes[1:]):
        key, kw, kb = jax.random.split(key, 3)
        bound = 1.0 / math.sqrt(fan_in)
        w = jax.random.uniform(kw, (fan_out, fan_in), jnp.float32, -bound, bound)
        b = jax.random.uniform(kb, (fan_out,), jnp.float32, -bound, bound)
        params.append((w, b))
    return params


def prepare_params(params):
    """Zero-pad to sublane multiples of 8, cast weights to bf16, biases to (out_p, 1) f32."""
    prepared = []
    for w, b in params:
        out_f, in_f = w.shape
        out_p, in_p = _round_up(out_f, 8), _round_up(in_f, 8)
        wp = jnp.zeros((out_p, in_p), jnp.float32).at[:out_f, :in_f].set(w)
        bp = jnp.zeros((out_p, 1), jnp.float32).at[:out_f, 0].set(b)
        prepared.append((wp.astype(jnp.bfloat16), bp))
    return prepared


# ------------------------------ References ---------------------------------- #
def mlp_reference(x, params, matmul_dtype=jnp.float32):
    """Pure-JAX reference in the standard (B, features) layout."""
    h = x.astype(jnp.float32)
    for i, (w, b) in enumerate(params):
        z = jnp.dot(h.astype(matmul_dtype), w.T.astype(matmul_dtype),
                    preferred_element_type=jnp.float32) + b[None, :]
        h = jnp.maximum(z, 0.0) if i < len(params) - 1 else jax.nn.sigmoid(z)
    return h


if __name__ == "__main__":
    key = jax.random.PRNGKey(0)
    key, kx = jax.random.split(key)

    input_size = 2       # parton-level default of the PyTorch module
    batch = 300          # small batch; exercises batch padding + multi-step grid

    x = jax.random.normal(kx, (batch, input_size), jnp.float32)
    raw_params = init_mlp_params(key, input_size=input_size)
    params = prepare_params(raw_params)

    # tile_b=128 here to exercise a >1-step grid at this small batch
    # (production default is 512-lane tiles).
    out = mlp_forward(x, params, tile_b=128)
    out = jax.block_until_ready(out)

    ref_bf16 = mlp_reference(x, raw_params, matmul_dtype=jnp.bfloat16)  # matches kernel math
    ref_f32 = mlp_reference(x, raw_params, matmul_dtype=jnp.float32)    # full-precision sanity

    assert out.shape == (batch, 1)
    assert jnp.allclose(out, ref_bf16, atol=1e-4, rtol=1e-4)
    assert jnp.allclose(out, ref_f32, atol=5e-2, rtol=5e-2)

    print("KERNEL_OK")
</pallas_src>

<mosaic_0001>
module attributes {stable_mosaic.version = 11 : i64} {
  func.func @mlp_kernel(%arg0: i32, %arg1: memref<8x128xbf16, #tpu.memory_space<vmem>>, %arg2: memref<56x8xbf16, #tpu.memory_space<vmem>>, %arg3: memref<56x1xf32, #tpu.memory_space<vmem>>, %arg4: memref<72x56xbf16, #tpu.memory_space<vmem>>, %arg5: memref<72x1xf32, #tpu.memory_space<vmem>>, %arg6: memref<152x72xbf16, #tpu.memory_space<vmem>>, %arg7: memref<152x1xf32, #tpu.memory_space<vmem>>, %arg8: memref<104x152xbf16, #tpu.memory_space<vmem>>, %arg9: memref<104x1xf32, #tpu.memory_space<vmem>>, %arg10: memref<56x104xbf16, #tpu.memory_space<vmem>>, %arg11: memref<56x1xf32, #tpu.memory_space<vmem>>, %arg12: memref<8x56xbf16, #tpu.memory_space<vmem>>, %arg13: memref<8x1xf32, #tpu.memory_space<vmem>>, %arg14: memref<8x128xf32, #tpu.memory_space<vmem>>) attributes {dimension_semantics = [#tpu.dimension_semantics<parallel>], iteration_bounds = array<i64: 3>, scalar_prefetch = 0 : i64, scratch_operands = 0 : i64, tpu.core_type = #tpu.core_type<tc>, window_params = [{transform_indices = @transform_0, window_bounds = array<i64: 8, 128>}, {pipeline_mode = #tpu.pipeline_mode<synchronous>, transform_indices = @transform_1, window_bounds = array<i64: 56, 8>}, {pipeline_mode = #tpu.pipeline_mode<synchronous>, transform_indices = @transform_2, window_bounds = array<i64: 56, 1>}, {pipeline_mode = #tpu.pipeline_mode<synchronous>, transform_indices = @transform_3, window_bounds = array<i64: 72, 56>}, {pipeline_mode = #tpu.pipeline_mode<synchronous>, transform_indices = @transform_4, window_bounds = array<i64: 72, 1>}, {pipeline_mode = #tpu.pipeline_mode<synchronous>, transform_indices = @transform_5, window_bounds = array<i64: 152, 72>}, {pipeline_mode = #tpu.pipeline_mode<synchronous>, transform_indices = @transform_6, window_bounds = array<i64: 152, 1>}, {pipeline_mode = #tpu.pipeline_mode<synchronous>, transform_indices = @transform_7, window_bounds = array<i64: 104, 152>}, {pipeline_mode = #tpu.pipeline_mode<synchronous>, transform_indices = @transform_8, window_bounds = array<i64: 104, 1>}, {pipeline_mode = #tpu.pipeline_mode<synchronous>, transform_indices = @transform_9, window_bounds = array<i64: 56, 104>}, {pipeline_mode = #tpu.pipeline_mode<synchronous>, transform_indices = @transform_10, window_bounds = array<i64: 56, 1>}, {pipeline_mode = #tpu.pipeline_mode<synchronous>, transform_indices = @transform_11, window_bounds = array<i64: 8, 56>}, {pipeline_mode = #tpu.pipeline_mode<synchronous>, transform_indices = @transform_12, window_bounds = array<i64: 8, 1>}, {transform_indices = @transform_13, window_bounds = array<i64: 8, 128>}]} {
    %c0 = arith.constant 0 : index
    %c0_0 = arith.constant 0 : index
    %0 = vector.load %arg1[%c0, %c0_0] : memref<8x128xbf16, #tpu.memory_space<vmem>>, vector<8x128xbf16>
    %c0_1 = arith.constant 0 : index
    %c0_2 = arith.constant 0 : index
    %1 = vector.load %arg2[%c0_1, %c0_2] : memref<56x8xbf16, #tpu.memory_space<vmem>>, vector<56x8xbf16>
    %cst = arith.constant dense<0.000000e+00> : vector<56x128xf32>
    %2 = tpu.matmul %1, %0, %cst {dimension_numbers = #tpu.dot_dimension_numbers<[1], [0], [0], [1], [0, 0, 1, 1], [], []>} : vector<56x8xbf16>, vector<8x128xbf16>, vector<56x128xf32> -> vector<56x128xf32>
    %c0_3 = arith.constant 0 : index
    %c0_4 = arith.constant 0 : index
    %3 = vector.load %arg3[%c0_3, %c0_4] : memref<56x1xf32, #tpu.memory_space<vmem>>, vector<56x1xf32>
    %4 = vector.broadcast %3 : vector<56x1xf32> to vector<56x128xf32>
    %5 = arith.addf %2, %4 : vector<56x128xf32>
    %cst_5 = arith.constant 0.000000e+00 : f32
    %6 = vector.broadcast %cst_5 : f32 to vector<56x128xf32>
    %7 = arith.maximumf %5, %6 : vector<56x128xf32>
    %c0_6 = arith.constant 0 : index
    %c0_7 = arith.constant 0 : index
    %8 = vector.load %arg4[%c0_6, %c0_7] : memref<72x56xbf16, #tpu.memory_space<vmem>>, vector<72x56xbf16>
    %9 = arith.truncf %7 : vector<56x128xf32> to vector<56x128xbf16>
    %cst_8 = arith.constant dense<0.000000e+00> : vector<72x128xf32>
    %10 = tpu.matmul %8, %9, %cst_8 {dimension_numbers = #tpu.dot_dimension_numbers<[1], [0], [0], [1], [0, 0, 1, 1], [], []>} : vector<72x56xbf16>, vector<56x128xbf16>, vector<72x128xf32> -> vector<72x128xf32>
    %c0_9 = arith.constant 0 : index
    %c0_10 = arith.constant 0 : index
    %11 = vector.load %arg5[%c0_9, %c0_10] : memref<72x1xf32, #tpu.memory_space<vmem>>, vector<72x1xf32>
    %12 = vector.broadcast %11 : vector<72x1xf32> to vector<72x128xf32>
    %13 = arith.addf %10, %12 : vector<72x128xf32>
    %cst_11 = arith.constant 0.000000e+00 : f32
    %14 = vector.broadcast %cst_11 : f32 to vector<72x128xf32>
    %15 = arith.maximumf %13, %14 : vector<72x128xf32>
    %c0_12 = arith.constant 0 : index
    %c0_13 = arith.constant 0 : index
    %16 = vector.load %arg6[%c0_12, %c0_13] : memref<152x72xbf16, #tpu.memory_space<vmem>>, vector<152x72xbf16>
    %17 = arith.truncf %15 : vector<72x128xf32> to vector<72x128xbf16>
    %cst_14 = arith.constant dense<0.000000e+00> : vector<152x128xf32>
    %18 = tpu.matmul %16, %17, %cst_14 {dimension_numbers = #tpu.dot_dimension_numbers<[1], [0], [0], [1], [0, 0, 1, 1], [], []>} : vector<152x72xbf16>, vector<72x128xbf16>, vector<152x128xf32> -> vector<152x128xf32>
    %c0_15 = arith.constant 0 : index
    %c0_16 = arith.constant 0 : index
    %19 = vector.load %arg7[%c0_15, %c0_16] : memref<152x1xf32, #tpu.memory_space<vmem>>, vector<152x1xf32>
    %20 = vector.broadcast %19 : vector<152x1xf32> to vector<152x128xf32>
    %21 = arith.addf %18, %20 : vector<152x128xf32>
    %cst_17 = arith.constant 0.000000e+00 : f32
    %22 = vector.broadcast %cst_17 : f32 to vector<152x128xf32>
    %23 = arith.maximumf %21, %22 : vector<152x128xf32>
    %c0_18 = arith.constant 0 : index
    %c0_19 = arith.constant 0 : index
    %24 = vector.load %arg8[%c0_18, %c0_19] : memref<104x152xbf16, #tpu.memory_space<vmem>>, vector<104x152xbf16>
    %25 = arith.truncf %23 : vector<152x128xf32> to vector<152x128xbf16>
    %cst_20 = arith.constant dense<0.000000e+00> : vector<104x128xf32>
    %26 = tpu.matmul %24, %25, %cst_20 {dimension_numbers = #tpu.dot_dimension_numbers<[1], [0], [0], [1], [0, 0, 1, 1], [], []>} : vector<104x152xbf16>, vector<152x128xbf16>, vector<104x128xf32> -> vector<104x128xf32>
    %c0_21 = arith.constant 0 : index
    %c0_22 = arith.constant 0 : index
    %27 = vector.load %arg9[%c0_21, %c0_22] : memref<104x1xf32, #tpu.memory_space<vmem>>, vector<104x1xf32>
    %28 = vector.broadcast %27 : vector<104x1xf32> to vector<104x128xf32>
    %29 = arith.addf %26, %28 : vector<104x128xf32>
    %cst_23 = arith.constant 0.000000e+00 : f32
    %30 = vector.broadcast %cst_23 : f32 to vector<104x128xf32>
    %31 = arith.maximumf %29, %30 : vector<104x128xf32>
    %c0_24 = arith.constant 0 : index
    %c0_25 = arith.constant 0 : index
    %32 = vector.load %arg10[%c0_24, %c0_25] : memref<56x104xbf16, #tpu.memory_space<vmem>>, vector<56x104xbf16>
    %33 = arith.truncf %31 : vector<104x128xf32> to vector<104x128xbf16>
    %cst_26 = arith.constant dense<0.000000e+00> : vector<56x128xf32>
    %34 = tpu.matmul %32, %33, %cst_26 {dimension_numbers = #tpu.dot_dimension_numbers<[1], [0], [0], [1], [0, 0, 1, 1], [], []>} : vector<56x104xbf16>, vector<104x128xbf16>, vector<56x128xf32> -> vector<56x128xf32>
    %c0_27 = arith.constant 0 : index
    %c0_28 = arith.constant 0 : index
    %35 = vector.load %arg11[%c0_27, %c0_28] : memref<56x1xf32, #tpu.memory_space<vmem>>, vector<56x1xf32>
    %36 = vector.broadcast %35 : vector<56x1xf32> to vector<56x128xf32>
    %37 = arith.addf %34, %36 : vector<56x128xf32>
    %cst_29 = arith.constant 0.000000e+00 : f32
    %38 = vector.broadcast %cst_29 : f32 to vector<56x128xf32>
    %39 = arith.maximumf %37, %38 : vector<56x128xf32>
    %c0_30 = arith.constant 0 : index
    %c0_31 = arith.constant 0 : index
    %40 = vector.load %arg12[%c0_30, %c0_31] : memref<8x56xbf16, #tpu.memory_space<vmem>>, vector<8x56xbf16>
    %41 = arith.truncf %39 : vector<56x128xf32> to vector<56x128xbf16>
    %cst_32 = arith.constant dense<0.000000e+00> : vector<8x128xf32>
    %42 = tpu.matmul %40, %41, %cst_32 {dimension_numbers = #tpu.dot_dimension_numbers<[1], [0], [0], [1], [0, 0, 1, 1], [], []>} : vector<8x56xbf16>, vector<56x128xbf16>, vector<8x128xf32> -> vector<8x128xf32>
    %c0_33 = arith.constant 0 : index
    %c0_34 = arith.constant 0 : index
    %43 = vector.load %arg13[%c0_33, %c0_34] : memref<8x1xf32, #tpu.memory_space<vmem>>, vector<8x1xf32>
    %44 = vector.broadcast %43 : vector<8x1xf32> to vector<8x128xf32>
    %45 = arith.addf %42, %44 : vector<8x128xf32>
    %46 = arith.negf %45 : vector<8x128xf32>
    %47 = math.exp %46 : vector<8x128xf32>
    %cst_35 = arith.constant 1.000000e+00 : f32
    %48 = vector.broadcast %cst_35 : f32 to vector<8x128xf32>
    %49 = arith.addf %48, %47 : vector<8x128xf32>
    %50 = arith.divf %48, %49 : vector<8x128xf32>
    %c0_36 = arith.constant 0 : index
    %c0_37 = arith.constant 0 : index
    %51 = vector.load %arg14[%c0_36, %c0_37] : memref<8x128xf32, #tpu.memory_space<vmem>>, vector<8x128xf32>
    tpu.vector_store %arg14[%c0_36, %c0_37], %50 {strides = array<i32>} : memref<8x128xf32, #tpu.memory_space<vmem>>, vector<8x128xf32>,
    return
  }
  func.func @transform_0(%arg0: i32) -> (i32, i32) {
    %c0_i32 = arith.constant 0 : i32
    %c0_i32_0 = arith.constant 0 : i32
    return %c0_i32, %arg0 : i32, i32
  }
  func.func @transform_1(%arg0: i32) -> (i32, i32) {
    %c0_i32 = arith.constant 0 : i32
    %c0_i32_0 = arith.constant 0 : i32
    %c0_i32_1 = arith.constant 0 : i32
    return %c0_i32, %c0_i32_0 : i32, i32
  }
  func.func @transform_2(%arg0: i32) -> (i32, i32) {
    %c0_i32 = arith.constant 0 : i32
    %c0_i32_0 = arith.constant 0 : i32
    %c0_i32_1 = arith.constant 0 : i32
    return %c0_i32, %c0_i32_0 : i32, i32
  }
  func.func @transform_3(%arg0: i32) -> (i32, i32) {
    %c0_i32 = arith.constant 0 : i32
    %c0_i32_0 = arith.constant 0 : i32
    %c0_i32_1 = arith.constant 0 : i32
    return %c0_i32, %c0_i32_0 : i32, i32
  }
  func.func @transform_4(%arg0: i32) -> (i32, i32) {
    %c0_i32 = arith.constant 0 : i32
    %c0_i32_0 = arith.constant 0 : i32
    %c0_i32_1 = arith.constant 0 : i32
    return %c0_i32, %c0_i32_0 : i32, i32
  }
  func.func @transform_5(%arg0: i32) -> (i32, i32) {
    %c0_i32 = arith.constant 0 : i32
    %c0_i32_0 = arith.constant 0 : i32
    %c0_i32_1 = arith.constant 0 : i32
    return %c0_i32, %c0_i32_0 : i32, i32
  }
  func.func @transform_6(%arg0: i32) -> (i32, i32) {
    %c0_i32 = arith.constant 0 : i32
    %c0_i32_0 = arith.constant 0 : i32
    %c0_i32_1 = arith.constant 0 : i32
    return %c0_i32, %c0_i32_0 : i32, i32
  }
  func.func @transform_7(%arg0: i32) -> (i32, i32) {
    %c0_i32 = arith.constant 0 : i32
    %c0_i32_0 = arith.constant 0 : i32
    %c0_i32_1 = arith.constant 0 : i32
    return %c0_i32, %c0_i32_0 : i32, i32
  }
  func.func @transform_8(%arg0: i32) -> (i32, i32) {
    %c0_i32 = arith.constant 0 : i32
    %c0_i32_0 = arith.constant 0 : i32
    %c0_i32_1 = arith.constant 0 : i32
    return %c0_i32, %c0_i32_0 : i32, i32
  }
  func.func @transform_9(%arg0: i32) -> (i32, i32) {
    %c0_i32 = arith.constant 0 : i32
    %c0_i32_0 = arith.constant 0 : i32
    %c0_i32_1 = arith.constant 0 : i32
    return %c0_i32, %c0_i32_0 : i32, i32
  }
  func.func @transform_10(%arg0: i32) -> (i32, i32) {
    %c0_i32 = arith.constant 0 : i32
    %c0_i32_0 = arith.constant 0 : i32
    %c0_i32_1 = arith.constant 0 : i32
    return %c0_i32, %c0_i32_0 : i32, i32
  }
  func.func @transform_11(%arg0: i32) -> (i32, i32) {
    %c0_i32 = arith.constant 0 : i32
    %c0_i32_0 = arith.constant 0 : i32
    %c0_i32_1 = arith.constant 0 : i32
    return %c0_i32, %c0_i32_0 : i32, i32
  }
  func.func @transform_12(%arg0: i32) -> (i32, i32) {
    %c0_i32 = arith.constant 0 : i32
    %c0_i32_0 = arith.constant 0 : i32
    %c0_i32_1 = arith.constant 0 : i32
    return %c0_i32, %c0_i32_0 : i32, i32
  }
  func.func @transform_13(%arg0: i32) -> (i32, i32) {
    %c0_i32 = arith.constant 0 : i32
    %c0_i32_0 = arith.constant 0 : i32
    return %c0_i32, %arg0 : i32, i32
  }
}

</mosaic_0001>

<llo_original>
// kernel: tpu_custom_call.1
$region0: #{tpu_custom_call.1}
  #allocation0 [shape = 'u32[]', space=smem, size = 0x4, offset = 0x4, fixed_abs, tag = 'smem constant byte address 0x4 - core index']
  #allocation1 [shape = 'u32[144,128]{1,0:T(1,128)}', space=vmem, size = 0x12000, scoped, tag = 'internal scratch']
  %s0 = inlined_call_operand.vmem [shape: bf16[8,384], index: 0, kind: input, shape index: {}]
  %s1 = inlined_call_operand.vmem [shape: bf16[56,8], index: 1, kind: input, shape index: {}]
  %s2 = inlined_call_operand.vmem [shape: f32[56,1], index: 2, kind: input, shape index: {}]
  %s3 = inlined_call_operand.vmem [shape: bf16[72,56], index: 3, kind: input, shape index: {}]
  %s4 = inlined_call_operand.vmem [shape: f32[72,1], index: 4, kind: input, shape index: {}]
  %s5 = inlined_call_operand.vmem [shape: bf16[152,72], index: 5, kind: input, shape index: {}]
  %s6 = inlined_call_operand.vmem [shape: f32[152,1], index: 6, kind: input, shape index: {}]
  %s7 = inlined_call_operand.vmem [shape: bf16[104,152], index: 7, kind: input, shape index: {}]
  %s8 = inlined_call_operand.vmem [shape: f32[104,1], index: 8, kind: input, shape index: {}]
  %s9 = inlined_call_operand.vmem [shape: bf16[56,104], index: 9, kind: input, shape index: {}]
  %s10 = inlined_call_operand.vmem [shape: f32[56,1], index: 10, kind: input, shape index: {}]
  %s11 = inlined_call_operand.vmem [shape: bf16[8,56], index: 11, kind: input, shape index: {}]
  %s12 = inlined_call_operand.vmem [shape: f32[8,1], index: 12, kind: input, shape index: {}]
  %s13 = inlined_call_operand.hbm [shape: f32[8,384], index: 13, kind: output, shape index: {}]
  %s14 = sld [smem:[#allocation0]]
  $region85: #{tpu_custom_call.1} parent=0
    _
  %s16 = ssub.s32 1, %s14
  %s17 = scalar_select 0, %s16, %s14
  $region1: #{tpu_custom_call.1} parent=0
    #allocation2 [shape = 'u8[8192]{0}', space=vmem, size = 0x2000, scoped, tag = 'output window, operand 0']
    #allocation3 [shape = 's32[2]{0}', space=sflag, size = 0x8, scoped, tag = 'scoped memory for tpu_custom_call.1']
    %18 = vsyncpa [#allocation3], 0
    %s19 = scalar_lea.sflag [#allocation3], 1
    %20 = vsyncpa %s19, 0
    loop: start=0, step=1, limit=5
    $region2: #{tpu_custom_call.1} parent=1 // loop_pre_header
      _
    $region3: #{tpu_custom_call.1} parent=1 // loop_header
      %s22 = sphi 0, %s26
      %p23 = scmp.ge.s32.totalorder %s22, 5
      %s32 = sphi 0, %s34
      %s35 = sphi 0, %s32
      %s36 = sphi 0, %s35
      %s52 = sphi 0, %s36
      %s56 = sphi 0, %s56
      %s58 = sphi 0, %s56
      %s59 = sphi 0, %s58
      %s73 = sphi 0, %s59
      %s77 = sphi 0, %s77
      %s79 = sphi 0, %s77
      %s80 = sphi 0, %s79
      %s94 = sphi 0, %s80
      %s98 = sphi 0, %s98
      %s100 = sphi 0, %s98
      %s101 = sphi 0, %s100
      %s115 = sphi 0, %s101
      %s119 = sphi 0, %s119
      %s121 = sphi 0, %s119
      %s122 = sphi 0, %s121
      %s136 = sphi 0, %s122
      %s140 = sphi 0, %s140
      %s142 = sphi 0, %s140
      %s143 = sphi 0, %s142
      %s157 = sphi 0, %s143
      %s161 = sphi 0, %s161
      %s163 = sphi 0, %s161
      %s164 = sphi 0, %s163
      %s178 = sphi 0, %s164
      %s182 = sphi 0, %s182
      %s184 = sphi 0, %s182
      %s185 = sphi 0, %s184
      %s199 = sphi 0, %s185
      %s203 = sphi 0, %s203
      %s205 = sphi 0, %s203
      %s206 = sphi 0, %s205
      %s220 = sphi 0, %s206
      %s224 = sphi 0, %s224
      %s226 = sphi 0, %s224
      %s227 = sphi 0, %s226
      %s241 = sphi 0, %s227
      %s245 = sphi 0, %s245
      %s247 = sphi 0, %s245
      %s248 = sphi 0, %s247
      %s262 = sphi 0, %s248
      %s266 = sphi 0, %s266
      %s268 = sphi 0, %s266
      %s269 = sphi 0, %s268
      %s283 = sphi 0, %s269
      %s287 = sphi 0, %s287
      %s289 = sphi 0, %s287
      %s290 = sphi 0, %s289
      %s304 = sphi 0, %s290
      %s310 = sphi 0, %s312
      %s313 = sphi 0, %s310
      %s314 = sphi 0, %s313
      %s330 = sphi 0, %s314
    $region4: #{tpu_custom_call.1} parent=1 // loop_header_branch
      %25 = sbr.rel (%p23) target = $region8
    $region5: #{tpu_custom_call.1} parent=1 // loop_body
      %s27 = ssub.s32 %s22, 1
      %s28 = ssub.s32 %s22, 2
      %s29 = sadd.s32 %s22, 1
      %s30 = ssub.s32 %s22, %s29
      %p31 = scmp.eq.s32.totalorder %s30, 0
      %s33 = sadd.s32 %s32, 1
      %s34 = scalar_select %p31, %s32, %s33
      %p37 = pneg %p31
      %p38 = scmp.eq.s32.totalorder %s22, 2
      %p39 = por %p37, %p38
      %p40 = scmp.ne.s32.totalorder %s32, %s35
      %p41 = scmp.eq.s32.totalorder %s22, 0
      %p42 = por %p40, %p41
      %p43 = scmp.ne.s32.totalorder %s32, %s35
      %p44 = scmp.eq.s32.totalorder %s27, 2
      %p45 = por %p43, %p44
      %p46 = scmp.ne.s32.totalorder %s35, %s36
      %p47 = scmp.eq.s32.totalorder %s27, 0
      %p48 = por %p46, %p47
      %p49 = scmp.ne.s32.totalorder %s35, %s36
      %p50 = scmp.eq.s32.totalorder %s28, 2
      %p51 = por %p49, %p50
      %p53 = scmp.ne.s32.totalorder %s36, %s52
      %p54 = scmp.eq.s32.totalorder %s28, 0
      %p55 = por %p53, %p54
      %s57 = sadd.s32 %s56, 1
      %p60 = scmp.eq.s32.totalorder %s22, 2
      %p61 = scmp.ne.s32.totalorder %s56, %s58
      %p62 = scmp.eq.s32.totalorder %s22, 0
      %p63 = por %p61, %p62
      %p64 = scmp.ne.s32.totalorder %s56, %s58
      %p65 = scmp.eq.s32.totalorder %s27, 2
      %p66 = por %p64, %p65
      %p67 = scmp.ne.s32.totalorder %s58, %s59
      %p68 = scmp.eq.s32.totalorder %s27, 0
      %p69 = por %p67, %p68
      %p70 = scmp.ne.s32.totalorder %s58, %s59
      %p71 = scmp.eq.s32.totalorder %s28, 2
      %p72 = por %p70, %p71
      %p74 = scmp.ne.s32.totalorder %s59, %s73
      %p75 = scmp.eq.s32.totalorder %s28, 0
      %p76 = por %p74, %p75
      %s78 = sadd.s32 %s77, 1
      %p81 = scmp.eq.s32.totalorder %s22, 2
      %p82 = scmp.ne.s32.totalorder %s77, %s79
      %p83 = scmp.eq.s32.totalorder %s22, 0
      %p84 = por %p82, %p83
      %p85 = scmp.ne.s32.totalorder %s77, %s79
      %p86 = scmp.eq.s32.totalorder %s27, 2
      %p87 = por %p85, %p86
      %p88 = scmp.ne.s32.totalorder %s79, %s80
      %p89 = scmp.eq.s32.totalorder %s27, 0
      %p90 = por %p88, %p89
      %p91 = scmp.ne.s32.totalorder %s79, %s80
      %p92 = scmp.eq.s32.totalorder %s28, 2
      %p93 = por %p91, %p92
      %p95 = scmp.ne.s32.totalorder %s80, %s94
      %p96 = scmp.eq.s32.totalorder %s28, 0
      %p97 = por %p95, %p96
      %s99 = sadd.s32 %s98, 1
      %p102 = scmp.eq.s32.totalorder %s22, 2
      %p103 = scmp.ne.s32.totalorder %s98, %s100
      %p104 = scmp.eq.s32.totalorder %s22, 0
      %p105 = por %p103, %p104
      %p106 = scmp.ne.s32.totalorder %s98, %s100
      %p107 = scmp.eq.s32.totalorder %s27, 2
      %p108 = por %p106, %p107
      %p109 = scmp.ne.s32.totalorder %s100, %s101
      %p110 = scmp.eq.s32.totalorder %s27, 0
      %p111 = por %p109, %p110
      %p112 = scmp.ne.s32.totalorder %s100, %s101
      %p113 = scmp.eq.s32.totalorder %s28, 2
      %p114 = por %p112, %p113
      %p116 = scmp.ne.s32.totalorder %s101, %s115
      %p117 = scmp.eq.s32.totalorder %s28, 0
      %p118 = por %p116, %p117
      %s120 = sadd.s32 %s119, 1
      %p123 = scmp.eq.s32.totalorder %s22, 2
      %p124 = scmp.ne.s32.totalorder %s119, %s121
      %p125 = scmp.eq.s32.totalorder %s22, 0
      %p126 = por %p124, %p125
      %p127 = scmp.ne.s32.totalorder %s119, %s121
      %p128 = scmp.eq.s32.totalorder %s27, 2
      %p129 = por %p127, %p128
      %p130 = scmp.ne.s32.totalorder %s121, %s122
      %p131 = scmp.eq.s32.totalorder %s27, 0
      %p132 = por %p130, %p131
      %p133 = scmp.ne.s32.totalorder %s121, %s122
      %p134 = scmp.eq.s32.totalorder %s28, 2
      %p135 = por %p133, %p134
      %p137 = scmp.ne.s32.totalorder %s122, %s136
      %p138 = scmp.eq.s32.totalorder %s28, 0
      %p139 = por %p137, %p138
      %s141 = sadd.s32 %s140, 1
      %p144 = scmp.eq.s32.totalorder %s22, 2
      %p145 = scmp.ne.s32.totalorder %s140, %s142
      %p146 = scmp.eq.s32.totalorder %s22, 0
      %p147 = por %p145, %p146
      %p148 = scmp.ne.s32.totalorder %s140, %s142
      %p149 = scmp.eq.s32.totalorder %s27, 2
      %p150 = por %p148, %p149
      %p151 = scmp.ne.s32.totalorder %s142, %s143
      %p152 = scmp.eq.s32.totalorder %s27, 0
      %p153 = por %p151, %p152
      %p154 = scmp.ne.s32.totalorder %s142, %s143
      %p155 = scmp.eq.s32.totalorder %s28, 2
      %p156 = por %p154, %p155
      %p158 = scmp.ne.s32.totalorder %s143, %s157
      %p159 = scmp.eq.s32.totalorder %s28, 0
      %p160 = por %p158, %p159
      %s162 = sadd.s32 %s161, 1
      %p165 = scmp.eq.s32.totalorder %s22, 2
      %p166 = scmp.ne.s32.totalorder %s161, %s163
      %p167 = scmp.eq.s32.totalorder %s22, 0
      %p168 = por %p166, %p167
      %p169 = scmp.ne.s32.totalorder %s161, %s163
      %p170 = scmp.eq.s32.totalorder %s27, 2
      %p171 = por %p169, %p170
      %p172 = scmp.ne.s32.totalorder %s163, %s164
      %p173 = scmp.eq.s32.totalorder %s27, 0
      %p174 = por %p172, %p173
      %p175 = scmp.ne.s32.totalorder %s163, %s164
      %p176 = scmp.eq.s32.totalorder %s28, 2
      %p177 = por %p175, %p176
      %p179 = scmp.ne.s32.totalorder %s164, %s178
      %p180 = scmp.eq.s32.totalorder %s28, 0
      %p181 = por %p179, %p180
      %s183 = sadd.s32 %s182, 1
      %p186 = scmp.eq.s32.totalorder %s22, 2
      %p187 = scmp.ne.s32.totalorder %s182, %s184
      %p188 = scmp.eq.s32.totalorder %s22, 0
      %p189 = por %p187, %p188
      %p190 = scmp.ne.s32.totalorder %s182, %s184
      %p191 = scmp.eq.s32.totalorder %s27, 2
      %p192 = por %p190, %p191
      %p193 = scmp.ne.s32.totalorder %s184, %s185
      %p194 = scmp.eq.s32.totalorder %s27, 0
      %p195 = por %p193, %p194
      %p196 = scmp.ne.s32.totalorder %s184, %s185
      %p197 = scmp.eq.s32.totalorder %s28, 2
      %p198 = por %p196, %p197
      %p200 = scmp.ne.s32.totalorder %s185, %s199
      %p201 = scmp.eq.s32.totalorder %s28, 0
      %p202 = por %p200, %p201
      %s204 = sadd.s32 %s203, 1
      %p207 = scmp.eq.s32.totalorder %s22, 2
      %p208 = scmp.ne.s32.totalorder %s203, %s205
      %p209 = scmp.eq.s32.totalorder %s22, 0
      %p210 = por %p208, %p209
      %p211 = scmp.ne.s32.totalorder %s203, %s205
      %p212 = scmp.eq.s32.totalorder %s27, 2
      %p213 = por %p211, %p212
      %p214 = scmp.ne.s32.totalorder %s205, %s206
      %p215 = scmp.eq.s32.totalorder %s27, 0
      %p216 = por %p214, %p215
      %p217 = scmp.ne.s32.totalorder %s205, %s206
      %p218 = scmp.eq.s32.totalorder %s28, 2
      %p219 = por %p217, %p218
      %p221 = scmp.ne.s32.totalorder %s206, %s220
      %p222 = scmp.eq.s32.totalorder %s28, 0
      %p223 = por %p221, %p222
      %s225 = sadd.s32 %s224, 1
      %p228 = scmp.eq.s32.totalorder %s22, 2
      %p229 = scmp.ne.s32.totalorder %s224, %s226
      %p230 = scmp.eq.s32.totalorder %s22, 0
      %p231 = por %p229, %p230
      %p232 = scmp.ne.s32.totalorder %s224, %s226
      %p233 = scmp.eq.s32.totalorder %s27, 2
      %p234 = por %p232, %p233
      %p235 = scmp.ne.s32.totalorder %s226, %s227
      %p236 = scmp.eq.s32.totalorder %s27, 0
      %p237 = por %p235, %p236
      %p238 = scmp.ne.s32.totalorder %s226, %s227
      %p239 = scmp.eq.s32.totalorder %s28, 2
      %p240 = por %p238, %p239
      %p242 = scmp.ne.s32.totalorder %s227, %s241
      %p243 = scmp.eq.s32.totalorder %s28, 0
      %p244 = por %p242, %p243
      %s246 = sadd.s32 %s245, 1
      %p249 = scmp.eq.s32.totalorder %s22, 2
      %p250 = scmp.ne.s32.totalorder %s245, %s247
      %p251 = scmp.eq.s32.totalorder %s22, 0
      %p252 = por %p250, %p251
      %p253 = scmp.ne.s32.totalorder %s245, %s247
      %p254 = scmp.eq.s32.totalorder %s27, 2
      %p255 = por %p253, %p254
      %p256 = scmp.ne.s32.totalorder %s247, %s248
      %p257 = scmp.eq.s32.totalorder %s27, 0
      %p258 = por %p256, %p257
      %p259 = scmp.ne.s32.totalorder %s247, %s248
      %p260 = scmp.eq.s32.totalorder %s28, 2
      %p261 = por %p259, %p260
      %p263 = scmp.ne.s32.totalorder %s248, %s262
      %p264 = scmp.eq.s32.totalorder %s28, 0
      %p265 = por %p263, %p264
      %s267 = sadd.s32 %s266, 1
      %p270 = scmp.eq.s32.totalorder %s22, 2
      %p271 = scmp.ne.s32.totalorder %s266, %s268
      %p272 = scmp.eq.s32.totalorder %s22, 0
      %p273 = por %p271, %p272
      %p274 = scmp.ne.s32.totalorder %s266, %s268
      %p275 = scmp.eq.s32.totalorder %s27, 2
      %p276 = por %p274, %p275
      %p277 = scmp.ne.s32.totalorder %s268, %s269
      %p278 = scmp.eq.s32.totalorder %s27, 0
      %p279 = por %p277, %p278
      %p280 = scmp.ne.s32.totalorder %s268, %s269
      %p281 = scmp.eq.s32.totalorder %s28, 2
      %p282 = por %p280, %p281
      %p284 = scmp.ne.s32.totalorder %s269, %s283
      %p285 = scmp.eq.s32.totalorder %s28, 0
      %p286 = por %p284, %p285
      %s288 = sadd.s32 %s287, 1
      %p291 = scmp.eq.s32.totalorder %s22, 2
      %p292 = scmp.ne.s32.totalorder %s287, %s289
      %p293 = scmp.eq.s32.totalorder %s22, 0
      %p294 = por %p292, %p293
      %p295 = scmp.ne.s32.totalorder %s287, %s289
      %p296 = scmp.eq.s32.totalorder %s27, 2
      %p297 = por %p295, %p296
      %p298 = scmp.ne.s32.totalorder %s289, %s290
      %p299 = scmp.eq.s32.totalorder %s27, 0
      %p300 = por %p298, %p299
      %p301 = scmp.ne.s32.totalorder %s289, %s290
      %p302 = scmp.eq.s32.totalorder %s28, 2
      %p303 = por %p301, %p302
      %p305 = scmp.ne.s32.totalorder %s290, %s304
      %p306 = scmp.eq.s32.totalorder %s28, 0
      %p307 = por %p305, %p306
      %s308 = ssub.s32 %s22, %s29
      %p309 = scmp.eq.s32.totalorder %s308, 0
      %s311 = sadd.s32 %s310, 1
      %s312 = scalar_select %p309, %s310, %s311
      %p315 = pneg %p309
      %p316 = scmp.eq.s32.totalorder %s22, 2
      %p317 = por %p315, %p316
      %p318 = scmp.ne.s32.totalorder %s310, %s313
      %p319 = scmp.eq.s32.totalorder %s22, 0
      %p320 = por %p318, %p319
      %p321 = scmp.ne.s32.totalorder %s310, %s313
      %p322 = scmp.eq.s32.totalorder %s27, 2
      %p323 = por %p321, %p322
      %p324 = scmp.ne.s32.totalorder %s313, %s314
      %p325 = scmp.eq.s32.totalorder %s27, 0
      %p326 = por %p324, %p325
      %p327 = scmp.ne.s32.totalorder %s313, %s314
      %p328 = scmp.eq.s32.totalorder %s28, 2
      %p329 = por %p327, %p328
      %p331 = scmp.ne.s32.totalorder %s314, %s330
      %p332 = scmp.eq.s32.totalorder %s28, 0
      %p333 = por %p331, %p332
      %p334 = scmp.le.s32.totalorder 1, %s22
      %p335 = scmp.lt.s32.totalorder %s22, 4
      %p336 = pnand %p334, %p335
      %p337 = pneg %p336
      // Predicated region
      $region9: #{tpu_custom_call.1} parent=5 // pred_check
        _
      $region10: #{tpu_custom_call.1} parent=5 // pred_check_branch
        %339 = sbr.rel (%p336) target = $region12
      $region11: #{tpu_custom_call.1} parent=5 // pred_region
        %s340 = ssub.s32 %s22, 1
        // Predicated region
        $region13: #{tpu_custom_call.1} parent=11 // pred_check
          %p341 = pneg %p69
        $region14: #{tpu_custom_call.1} parent=11 // pred_check_branch
          %343 = sbr.rel (%p341) target = $region16
        $region15: #{tpu_custom_call.1} parent=11 // pred_region
          _
        $region16: #{tpu_custom_call.1} parent=11 // pred_fallthru
          _
        // Predicated region
        $region17: #{tpu_custom_call.1} parent=11 // pred_check
          %p344 = pneg %p90
        $region18: #{tpu_custom_call.1} parent=11 // pred_check_branch
          %346 = sbr.rel (%p344) target = $region20
        $region19: #{tpu_custom_call.1} parent=11 // pred_region
          _
        $region20: #{tpu_custom_call.1} parent=11 // pred_fallthru
          _
        // Predicated region
        $region21: #{tpu_custom_call.1} parent=11 // pred_check
          %p347 = pneg %p111
        $region22: #{tpu_custom_call.1} parent=11 // pred_check_branch
          %349 = sbr.rel (%p347) target = $region24
        $region23: #{tpu_custom_call.1} parent=11 // pred_region
          _
        $region24: #{tpu_custom_call.1} parent=11 // pred_fallthru
          _
        // Predicated region
        $region25: #{tpu_custom_call.1} parent=11 // pred_check
          %p350 = pneg %p132
        $region26: #{tpu_custom_call.1} parent=11 // pred_check_branch
          %352 = sbr.rel (%p350) target = $region28
        $region27: #{tpu_custom_call.1} parent=11 // pred_region
          _
        $region28: #{tpu_custom_call.1} parent=11 // pred_fallthru
          _
        // Predicated region
        $region29: #{tpu_custom_call.1} parent=11 // pred_check
          %p353 = pneg %p153
        $region30: #{tpu_custom_call.1} parent=11 // pred_check_branch
          %355 = sbr.rel (%p353) target = $region32
        $region31: #{tpu_custom_call.1} parent=11 // pred_region
          _
        $region32: #{tpu_custom_call.1} parent=11 // pred_fallthru
          _
        // Predicated region
        $region33: #{tpu_custom_call.1} parent=11 // pred_check
          %p356 = pneg %p174
        $region34: #{tpu_custom_call.1} parent=11 // pred_check_branch
          %358 = sbr.rel (%p356) target = $region36
        $region35: #{tpu_custom_call.1} parent=11 // pred_region
          _
        $region36: #{tpu_custom_call.1} parent=11 // pred_fallthru
          _
        // Predicated region
        $region37: #{tpu_custom_call.1} parent=11 // pred_check
          %p359 = pneg %p195
        $region38: #{tpu_custom_call.1} parent=11 // pred_check_branch
          %361 = sbr.rel (%p359) target = $region40
        $region39: #{tpu_custom_call.1} parent=11 // pred_region
          _
        $region40: #{tpu_custom_call.1} parent=11 // pred_fallthru
          _
        // Predicated region
        $region41: #{tpu_custom_call.1} parent=11 // pred_check
          %p362 = pneg %p216
        $region42: #{tpu_custom_call.1} parent=11 // pred_check_branch
          %364 = sbr.rel (%p362) target = $region44
        $region43: #{tpu_custom_call.1} parent=11 // pred_region
          _
        $region44: #{tpu_custom_call.1} parent=11 // pred_fallthru
          _
        // Predicated region
        $region45: #{tpu_custom_call.1} parent=11 // pred_check
          %p365 = pneg %p237
        $region46: #{tpu_custom_call.1} parent=11 // pred_check_branch
          %367 = sbr.rel (%p365) target = $region48
        $region47: #{tpu_custom_call.1} parent=11 // pred_region
          _
        $region48: #{tpu_custom_call.1} parent=11 // pred_fallthru
          _
        // Predicated region
        $region49: #{tpu_custom_call.1} parent=11 // pred_check
          %p368 = pneg %p258
        $region50: #{tpu_custom_call.1} parent=11 // pred_check_branch
          %370 = sbr.rel (%p368) target = $region52
        $region51: #{tpu_custom_call.1} parent=11 // pred_region
          _
        $region52: #{tpu_custom_call.1} parent=11 // pred_fallthru
          _
        // Predicated region
        $region53: #{tpu_custom_call.1} parent=11 // pred_check
          %p371 = pneg %p279
        $region54: #{tpu_custom_call.1} parent=11 // pred_check_branch
          %373 = sbr.rel (%p371) target = $region56
        $region55: #{tpu_custom_call.1} parent=11 // pred_region
          _
        $region56: #{tpu_custom_call.1} parent=11 // pred_fallthru
          _
        // Predicated region
        $region57: #{tpu_custom_call.1} parent=11 // pred_check
          %p374 = pneg %p300
        $region58: #{tpu_custom_call.1} parent=11 // pred_check_branch
          %376 = sbr.rel (%p374) target = $region60
        $region59: #{tpu_custom_call.1} parent=11 // pred_region
          _
        $region60: #{tpu_custom_call.1} parent=11 // pred_fallthru
          _
      $region12: #{tpu_custom_call.1} parent=5 // pred_fallthru
        _
      %p377 = scmp.lt.s32.totalorder %s22, 3
      // Predicated region
      $region61: #{tpu_custom_call.1} parent=5 // pred_check
        %p378 = pneg %p377
      $region62: #{tpu_custom_call.1} parent=5 // pred_check_branch
        %380 = sbr.rel (%p378) target = $region64
      $region63: #{tpu_custom_call.1} parent=5 // pred_region
        // Predicated region
        $region65: #{tpu_custom_call.1} parent=63 // pred_check
          %p381 = pneg %p42
        $region66: #{tpu_custom_call.1} parent=63 // pred_check_branch
          %383 = sbr.rel (%p381) target = $region68
        $region67: #{tpu_custom_call.1} parent=63 // pred_region
          %p384 = scmp.lt.s32.totalorder %s22, 2
          %s385 = scalar_select %p384, %s22, 2
          %s386 = smul.addr %s385, 4
          %s387 = scalar_lea.vmem %s0, %s386
        $region68: #{tpu_custom_call.1} parent=63 // pred_fallthru
          _
      $region64: #{tpu_custom_call.1} parent=5 // pred_fallthru
        _
      %p388 = scmp.le.s32.totalorder 1, %s22
      %p389 = scmp.lt.s32.totalorder %s22, 4
      %p390 = pnand %p388, %p389
      %p391 = pneg %p390
      // Predicated region
      $region69: #{tpu_custom_call.1} parent=5 // pred_check
        _
      $region70: #{tpu_custom_call.1} parent=5 // pred_check_branch
        %393 = sbr.rel (%p390) target = $region72
      $region71: #{tpu_custom_call.1} parent=5 // pred_region
        %s394 = ssub.s32 %s22, 1
        %p395 = scmp.lt.s32.totalorder %s27, 2
        %s396 = scalar_select %p395, %s27, 2
        %s397 = smul.addr %s396, 4
        %s398 = scalar_lea.vmem %s0, %s397
        %p399 = pneg %p48
        %p400 = pneg %p45
        %p401 = pneg %p69
        %p402 = pneg %p66
        %p403 = pneg %p90
        %p404 = pneg %p87
        %p405 = pneg %p111
        %p406 = pneg %p108
        %p407 = pneg %p132
        %p408 = pneg %p129
        %p409 = pneg %p153
        %p410 = pneg %p150
        %p411 = pneg %p174
        %p412 = pneg %p171
        %p413 = pneg %p195
        %p414 = pneg %p192
        %p415 = pneg %p216
        %p416 = pneg %p213
        %p417 = pneg %p237
        %p418 = pneg %p234
        %p419 = pneg %p258
        %p420 = pneg %p255
        %p421 = pneg %p279
        %p422 = pneg %p276
        %p423 = pneg %p300
        %p424 = pneg %p297
        %p425 = pneg %p326
        %p426 = pneg %p323
        %s427 = sand.u32 %s313, 1
        %s428 = scalar_lea.sflag [#allocation3], %s427
        %s429 = sand.u32 %s313, 1
        %s430 = smul.addr %s429, 8
        %s431 = scalar_lea.vmem [#allocation2], %s430
        %p432 = scmp.lt.s32.totalorder %s27, 2
        %s433 = scalar_select %p432, %s27, 2
        %s434 = smul.addr %s433, 4
        %s435 = scalar_lea.vmem %s0, %s434
        %v437 = vld [vmem:[%s435] sm:$0xf]
        %v438 = vld [vmem:[%s1] sm:$0xf]
        %v439 = vld [vmem:[%s1 + $0x4] sm:$0xf]
        %v440 = vld [vmem:[%s1 + $0x8] sm:$0xf]
        %v441 = vld [vmem:[%s1 + $0xc] sm:$0xf]
        %v442 = vld [vmem:[%s1 + $0x10] sm:$0xf]
        %v443 = vld [vmem:[%s1 + $0x14] sm:$0xf]
        %v444 = vld [vmem:[%s1 + $0x18] sm:$0xf]
        %v445 = vld [vmem:[%s2] sm:$0xff]
        %v446 = vld [vmem:[%s2 + $0x8] sm:$0xff]
        %v447 = vld [vmem:[%s2 + $0x10] sm:$0xff]
        %v448 = vld [vmem:[%s2 + $0x18] sm:$0xff]
        %v449 = vld [vmem:[%s2 + $0x20] sm:$0xff]
        %v450 = vld [vmem:[%s2 + $0x28] sm:$0xff]
        %v451 = vld [vmem:[%s2 + $0x30] sm:$0xff]
        %453 = vset.pattern.permute.xlu0 0
        %454 = vperm.xlu0 %453, %v445
        %v455 = vpop.permute.xlu0 %454
        %458 = vset.pattern.permute.xlu0 0
        %459 = vperm.xlu0 %458, %v446
        %v460 = vpop.permute.xlu0 %459
        %463 = vset.pattern.permute.xlu0 0
        %464 = vperm.xlu0 %463, %v447
        %v465 = vpop.permute.xlu0 %464
        %468 = vset.pattern.permute.xlu0 0
        %469 = vperm.xlu0 %468, %v448
        %v470 = vpop.permute.xlu0 %469
        %473 = vset.pattern.permute.xlu0 0
        %474 = vperm.xlu0 %473, %v449
        %v475 = vpop.permute.xlu0 %474
        %478 = vset.pattern.permute.xlu0 0
        %479 = vperm.xlu0 %478, %v450
        %v480 = vpop.permute.xlu0 %479
        %483 = vset.pattern.permute.xlu0 0
        %484 = vperm.xlu0 %483, %v451
        %v485 = vpop.permute.xlu0 %484
        %v494 = vunpack.c.l.b16 %v438
        %v495 = vunpack.c.l.b16 %v439
        %v496 = vunpack.c.l.b16 %v440
        %v497 = vunpack.c.l.b16 %v441
        %v498 = vunpack.c.l.b16 %v442
        %v499 = vunpack.c.l.b16 %v443
        %v500 = vunpack.c.l.b16 %v444
        %v501 = vpack.c.b16 %v495, %v494
        %v502 = vpack.c.b16 %v497, %v496
        %v503 = vpack.c.b16 %v499, %v498
        %v504 = vpack.c.b16 %v500, %v500
        %vm505 = vcmask 64512
        %v507 = vsel %vm505, %v501, 0
        %v510 = vsel %vm505, %v502, 0
        %v513 = vsel %vm505, %v503, 0
        %v516 = vsel %vm505, %v504, 0
        %vm518 = vcmask 1043456
        %v520 = vsel %vm518, %v437, 0
        %522 = vmatprep.subr.bf16.mxu0 0
        %523 = vmatpush1.bf16.msra.mxu0 %v520
        %524 = vmatprep.subr.bf16.mxu0 0
        %525 = vmatpush1.bf16.msra.mxu0 0
        %526 = vmatprep.subr.bf16.mxu0 0
        %527 = vmatpush1.bf16.msra.mxu0 0
        %528 = vmatprep.subr.bf16.mxu0 0
        %529 = vmatpush1.bf16.msra.mxu0 0
        %530 = vmatprep.subr.bf16.mxu0 0
        %531 = vmatpush1.bf16.msra.mxu0 0
        %532 = vmatprep.subr.bf16.mxu0 0
        %533 = vmatpush1.bf16.msra.mxu0 0
        %534 = vmatprep.subr.bf16.mxu0 0
        %535 = vmatpush1.bf16.msra.mxu0 0
        %536 = vmatprep.subr.bf16.mxu0 0
        %537 = vmatpush1.bf16.msra.mxu0 0
        %538 = vmatprep.subr.bf16.mxu0 0
        %539 = vmatpush1.bf16.msra.mxu0 0
        %540 = vmatprep.subr.bf16.mxu0 0
        %541 = vmatpush1.bf16.msra.mxu0 0
        %542 = vmatprep.subr.bf16.mxu0 0
        %543 = vmatpush1.bf16.msra.mxu0 0
        %544 = vmatprep.subr.bf16.mxu0 0
        %545 = vmatpush1.bf16.msra.mxu0 0
        %546 = vmatprep.subr.bf16.mxu0 0
        %547 = vmatpush1.bf16.msra.mxu0 0
        %548 = vmatprep.subr.bf16.mxu0 0
        %549 = vmatpush1.bf16.msra.mxu0 0
        %550 = vmatprep.subr.bf16.mxu0 0
        %551 = vmatpush1.bf16.msra.mxu0 0
        %552 = vmatprep.subr.bf16.mxu0 0
        %553 = vmatpush1.bf16.msra.mxu0 0
        %554 = vmatprep.mubr.bf16.mxu0 0
        %555 = vmatmul.mubr.bf16.gmra.mrb[0].mxu0 %v507
        %v556 = vpop.f32.mrb[0].mxu0
        %v557 = vadd.f32 %v455, %v556
        %v558 = vpop.f32.mrb[0].mxu0
        %v559 = vpop.f32.mrb[0].mxu0
        %v560 = vadd.f32 %v460, %v559
        %v561 = vpop.f32.mrb[0].mxu0
        %562 = vmatprep.mubr.bf16.mxu0 0
        %563 = vmatmul.mubr.bf16.gmra.mrb[0].mxu0 %v510
        %v564 = vpop.f32.mrb[0].mxu0
        %v565 = vadd.f32 %v465, %v564
        %v566 = vpop.f32.mrb[0].mxu0
        %v567 = vpop.f32.mrb[0].mxu0
        %v568 = vadd.f32 %v470, %v567
        %v569 = vpop.f32.mrb[0].mxu0
        %570 = vmatprep.mubr.bf16.mxu0 0
        %571 = vmatmul.mubr.bf16.gmra.mrb[0].mxu0 %v513
        %v572 = vpop.f32.mrb[0].mxu0
        %v573 = vadd.f32 %v475, %v572
        %v574 = vpop.f32.mrb[0].mxu0
        %v575 = vpop.f32.mrb[0].mxu0
        %v576 = vadd.f32 %v480, %v575
        %v577 = vpop.f32.mrb[0].mxu0
        %578 = vmatprep.mubr.bf16.mxu0 0
        %579 = vmatmul.mubr.bf16.gmra.mrb[0].mxu0 %v516
        %v580 = vpop.f32.mrb[0].mxu0
        %v581 = vadd.f32 %v485, %v580
        %v582 = vpop.f32.mrb[0].mxu0
        %v583 = vpop.f32.mrb[0].mxu0
        %v584 = vpop.f32.mrb[0].mxu0
        %585 = vdwg.mxu0
        %v586 = vmax.f32 %v557, 0.0
        %v587 = vmax.f32 %v560, 0.0
        %v588 = vmax.f32 %v565, 0.0
        %v589 = vmax.f32 %v568, 0.0
        %v590 = vmax.f32 %v573, 0.0
        %v591 = vmax.f32 %v576, 0.0
        %v592 = vmax.f32 %v581, 0.0
        %v593 = vld [vmem:[%s3] sm:$0xf]
        %v594 = vld [vmem:[%s3 + $0x4] sm:$0xf]
        %v595 = vld [vmem:[%s3 + $0x8] sm:$0xf]
        %v596 = vld [vmem:[%s3 + $0xc] sm:$0xf]
        %v597 = vld [vmem:[%s3 + $0x10] sm:$0xf]
        %v598 = vld [vmem:[%s3 + $0x14] sm:$0xf]
        %v599 = vld [vmem:[%s3 + $0x18] sm:$0xf]
        %v600 = vld [vmem:[%s3 + $0x1c] sm:$0xf]
        %v601 = vld [vmem:[%s3 + $0x20] sm:$0xf]
        %v602 = vpack.c.bf16 %v587, %v586
        %v603 = vpack.c.bf16 %v589, %v588
        %v604 = vpack.c.bf16 %v591, %v590
        %v605 = vpack.c.bf16 %v592, %v592
        %v606 = vld [vmem:[%s4] sm:$0xff]
        %v607 = vld [vmem:[%s4 + $0x8] sm:$0xff]
        %v608 = vld [vmem:[%s4 + $0x10] sm:$0xff]
        %v609 = vld [vmem:[%s4 + $0x18] sm:$0xff]
        %v610 = vld [vmem:[%s4 + $0x20] sm:$0xff]
        %v611 = vld [vmem:[%s4 + $0x28] sm:$0xff]
        %v612 = vld [vmem:[%s4 + $0x30] sm:$0xff]
        %v613 = vld [vmem:[%s4 + $0x38] sm:$0xff]
        %v614 = vld [vmem:[%s4 + $0x40] sm:$0xff]
        %616 = vset.pattern.permute.xlu0 0
        %617 = vperm.xlu0 %616, %v606
        %v618 = vpop.permute.xlu0 %617
        %621 = vset.pattern.permute.xlu0 0
        %622 = vperm.xlu0 %621, %v607
        %v623 = vpop.permute.xlu0 %622
        %626 = vset.pattern.permute.xlu0 0
        %627 = vperm.xlu0 %626, %v608
        %v628 = vpop.permute.xlu0 %627
        %631 = vset.pattern.permute.xlu0 0
        %632 = vperm.xlu0 %631, %v609
        %v633 = vpop.permute.xlu0 %632
        %636 = vset.pattern.permute.xlu0 0
        %637 = vperm.xlu0 %636, %v610
        %v638 = vpop.permute.xlu0 %637
        %641 = vset.pattern.permute.xlu0 0
        %642 = vperm.xlu0 %641, %v611
        %v643 = vpop.permute.xlu0 %642
        %646 = vset.pattern.permute.xlu0 0
        %647 = vperm.xlu0 %646, %v612
        %v648 = vpop.permute.xlu0 %647
        %651 = vset.pattern.permute.xlu0 0
        %652 = vperm.xlu0 %651, %v613
        %v653 = vpop.permute.xlu0 %652
        %656 = vset.pattern.permute.xlu0 0
        %657 = vperm.xlu0 %656, %v614
        %v658 = vpop.permute.xlu0 %657
        %v669 = vunpack.c.l.b16 %v593
        %v670 = vunpack.c.l.b16 %v594
        %v671 = vunpack.c.l.b16 %v595
        %v672 = vunpack.c.l.b16 %v596
        %v673 = vunpack.c.l.b16 %v597
        %v674 = vunpack.c.l.b16 %v598
        %v675 = vunpack.c.l.b16 %v599
        %v676 = vunpack.c.l.b16 %v600
        %v677 = vunpack.c.l.b16 %v601
        %v678 = vpack.c.b16 %v670, %v669
        %v679 = vpack.c.b16 %v672, %v671
        %v680 = vpack.c.b16 %v674, %v673
        %v681 = vpack.c.b16 %v676, %v675
        %v682 = vpack.c.b16 %v677, %v677
        %vm683 = vcmask 457728
        %v685 = vsel %vm683, %v678, 0
        %v688 = vsel %vm683, %v679, 0
        %v691 = vsel %vm683, %v680, 0
        %v694 = vsel %vm683, %v681, 0
        %v697 = vsel %vm683, %v682, 0
        %v700 = vsel %vm518, %v605, 0
        %702 = vmatprep.subr.bf16.mxu0 0
        %703 = vmatpush1.bf16.msra.mxu0 %v602
        %704 = vmatprep.subr.bf16.mxu0 0
        %705 = vmatpush1.bf16.msra.mxu0 %v603
        %706 = vmatprep.subr.bf16.mxu0 0
        %707 = vmatpush1.bf16.msra.mxu0 %v604
        %708 = vmatprep.subr.bf16.mxu0 0
        %709 = vmatpush1.bf16.msra.mxu0 %v700
        %710 = vmatprep.subr.bf16.mxu0 0
        %711 = vmatpush1.bf16.msra.mxu0 0
        %712 = vmatprep.subr.bf16.mxu0 0
        %713 = vmatpush1.bf16.msra.mxu0 0
        %714 = vmatprep.subr.bf16.mxu0 0
        %715 = vmatpush1.bf16.msra.mxu0 0
        %716 = vmatprep.subr.bf16.mxu0 0
        %717 = vmatpush1.bf16.msra.mxu0 0
        %718 = vmatprep.subr.bf16.mxu0 0
        %719 = vmatpush1.bf16.msra.mxu0 0
        %720 = vmatprep.subr.bf16.mxu0 0
        %721 = vmatpush1.bf16.msra.mxu0 0
        %722 = vmatprep.subr.bf16.mxu0 0
        %723 = vmatpush1.bf16.msra.mxu0 0
        %724 = vmatprep.subr.bf16.mxu0 0
        %725 = vmatpush1.bf16.msra.mxu0 0
        %726 = vmatprep.subr.bf16.mxu0 0
        %727 = vmatpush1.bf16.msra.mxu0 0
        %728 = vmatprep.subr.bf16.mxu0 0
        %729 = vmatpush1.bf16.msra.mxu0 0
        %730 = vmatprep.subr.bf16.mxu0 0
        %731 = vmatpush1.bf16.msra.mxu0 0
        %732 = vmatprep.subr.bf16.mxu0 0
        %733 = vmatpush1.bf16.msra.mxu0 0
        %734 = vmatprep.mubr.bf16.mxu0 0
        %735 = vmatmul.mubr.bf16.gmra.mrb[0].mxu0 %v685
        %v736 = vpop.f32.mrb[0].mxu0
        %v737 = vadd.f32 %v618, %v736
        %v738 = vpop.f32.mrb[0].mxu0
        %v739 = vpop.f32.mrb[0].mxu0
        %v740 = vadd.f32 %v623, %v739
        %v741 = vpop.f32.mrb[0].mxu0
        %742 = vmatprep.mubr.bf16.mxu0 0
        %743 = vmatmul.mubr.bf16.gmra.mrb[0].mxu0 %v688
        %v744 = vpop.f32.mrb[0].mxu0
        %v745 = vadd.f32 %v628, %v744
        %v746 = vpop.f32.mrb[0].mxu0
        %v747 = vpop.f32.mrb[0].mxu0
        %v748 = vadd.f32 %v633, %v747
        %v749 = vpop.f32.mrb[0].mxu0
        %750 = vmatprep.mubr.bf16.mxu0 0
        %751 = vmatmul.mubr.bf16.gmra.mrb[0].mxu0 %v691
        %v752 = vpop.f32.mrb[0].mxu0
        %v753 = vadd.f32 %v638, %v752
        %v754 = vpop.f32.mrb[0].mxu0
        %v755 = vpop.f32.mrb[0].mxu0
        %v756 = vadd.f32 %v643, %v755
        %v757 = vpop.f32.mrb[0].mxu0
        %758 = vmatprep.mubr.bf16.mxu0 0
        %759 = vmatmul.mubr.bf16.gmra.mrb[0].mxu0 %v694
        %v760 = vpop.f32.mrb[0].mxu0
        %v761 = vadd.f32 %v648, %v760
        %v762 = vpop.f32.mrb[0].mxu0
        %v763 = vpop.f32.mrb[0].mxu0
        %v764 = vadd.f32 %v653, %v763
        %v765 = vpop.f32.mrb[0].mxu0
        %766 = vmatprep.mubr.bf16.mxu0 0
        %767 = vmatmul.mubr.bf16.gmra.mrb[0].mxu0 %v697
        %v768 = vpop.f32.mrb[0].mxu0
        %v769 = vadd.f32 %v658, %v768
        %v770 = vpop.f32.mrb[0].mxu0
        %v771 = vpop.f32.mrb[0].mxu0
        %v772 = vpop.f32.mrb[0].mxu0
        %773 = vdwg.mxu0
        %v774 = vmax.f32 %v737, 0.0
        %v775 = vmax.f32 %v740, 0.0
        %v776 = vmax.f32 %v745, 0.0
        %v777 = vmax.f32 %v748, 0.0
        %v778 = vmax.f32 %v753, 0.0
        %v779 = vmax.f32 %v756, 0.0
        %v780 = vmax.f32 %v761, 0.0
        %v781 = vmax.f32 %v764, 0.0
        %v782 = vmax.f32 %v769, 0.0
        %v783 = vld [vmem:[%s5] sm:$0xf]
        %v784 = vld [vmem:[%s5 + $0x4] sm:$0xf]
        %v785 = vld [vmem:[%s5 + $0x8] sm:$0xf]
        %v786 = vld [vmem:[%s5 + $0xc] sm:$0xf]
        %v787 = vld [vmem:[%s5 + $0x10] sm:$0xf]
        %v788 = vld [vmem:[%s5 + $0x14] sm:$0xf]
        %v789 = vld [vmem:[%s5 + $0x18] sm:$0xf]
        %v790 = vld [vmem:[%s5 + $0x1c] sm:$0xf]
        %v791 = vld [vmem:[%s5 + $0x20] sm:$0xf]
        %v792 = vld [vmem:[%s5 + $0x24] sm:$0xf]
        %v793 = vld [vmem:[%s5 + $0x28] sm:$0xf]
        %v794 = vld [vmem:[%s5 + $0x2c] sm:$0xf]
        %v795 = vld [vmem:[%s5 + $0x30] sm:$0xf]
        %v796 = vld [vmem:[%s5 + $0x34] sm:$0xf]
        %v797 = vld [vmem:[%s5 + $0x38] sm:$0xf]
        %v798 = vld [vmem:[%s5 + $0x3c] sm:$0xf]
        %v799 = vld [vmem:[%s5 + $0x40] sm:$0xf]
        %v800 = vld [vmem:[%s5 + $0x44] sm:$0xf]
        %v801 = vld [vmem:[%s5 + $0x48] sm:$0xf]
        %v802 = vpack.c.bf16 %v775, %v774
        %v803 = vpack.c.bf16 %v777, %v776
        %v804 = vpack.c.bf16 %v779, %v778
        %v805 = vpack.c.bf16 %v781, %v780
        %v806 = vpack.c.bf16 %v782, %v782
        %v807 = vld [vmem:[%s6] sm:$0xff]
        %v808 = vld [vmem:[%s6 + $0x8] sm:$0xff]
        %v809 = vld [vmem:[%s6 + $0x10] sm:$0xff]
        %v810 = vld [vmem:[%s6 + $0x18] sm:$0xff]
        %v811 = vld [vmem:[%s6 + $0x20] sm:$0xff]
        %v812 = vld [vmem:[%s6 + $0x28] sm:$0xff]
        %v813 = vld [vmem:[%s6 + $0x30] sm:$0xff]
        %v814 = vld [vmem:[%s6 + $0x38] sm:$0xff]
        %v815 = vld [vmem:[%s6 + $0x40] sm:$0xff]
        %v816 = vld [vmem:[%s6 + $0x48] sm:$0xff]
        %v817 = vld [vmem:[%s6 + $0x50] sm:$0xff]
        %v818 = vld [vmem:[%s6 + $0x58] sm:$0xff]
        %v819 = vld [vmem:[%s6 + $0x60] sm:$0xff]
        %v820 = vld [vmem:[%s6 + $0x68] sm:$0xff]
        %v821 = vld [vmem:[%s6 + $0x70] sm:$0xff]
        %v822 = vld [vmem:[%s6 + $0x78] sm:$0xff]
        %v823 = vld [vmem:[%s6 + $0x80] sm:$0xff]
        %v824 = vld [vmem:[%s6 + $0x88] sm:$0xff]
        %v825 = vld [vmem:[%s6 + $0x90] sm:$0xff]
        %827 = vset.pattern.permute.xlu0 0
        %828 = vperm.xlu0 %827, %v807
        %v829 = vpop.permute.xlu0 %828
        %832 = vset.pattern.permute.xlu0 0
        %833 = vperm.xlu0 %832, %v808
        %v834 = vpop.permute.xlu0 %833
        %837 = vset.pattern.permute.xlu0 0
        %838 = vperm.xlu0 %837, %v809
        %v839 = vpop.permute.xlu0 %838
        %842 = vset.pattern.permute.xlu0 0
        %843 = vperm.xlu0 %842, %v810
        %v844 = vpop.permute.xlu0 %843
        %847 = vset.pattern.permute.xlu0 0
        %848 = vperm.xlu0 %847, %v811
        %v849 = vpop.permute.xlu0 %848
        %852 = vset.pattern.permute.xlu0 0
        %853 = vperm.xlu0 %852, %v812
        %v854 = vpop.permute.xlu0 %853
        %857 = vset.pattern.permute.xlu0 0
        %858 = vperm.xlu0 %857, %v813
        %v859 = vpop.permute.xlu0 %858
        %862 = vset.pattern.permute.xlu0 0
        %863 = vperm.xlu0 %862, %v814
        %v864 = vpop.permute.xlu0 %863
        %867 = vset.pattern.permute.xlu0 0
        %868 = vperm.xlu0 %867, %v815
        %v869 = vpop.permute.xlu0 %868
        %872 = vset.pattern.permute.xlu0 0
        %873 = vperm.xlu0 %872, %v816
        %v874 = vpop.permute.xlu0 %873
        %877 = vset.pattern.permute.xlu0 0
        %878 = vperm.xlu0 %877, %v817
        %v879 = vpop.permute.xlu0 %878
        %882 = vset.pattern.permute.xlu0 0
        %883 = vperm.xlu0 %882, %v818
        %v884 = vpop.permute.xlu0 %883
        %887 = vset.pattern.permute.xlu0 0
        %888 = vperm.xlu0 %887, %v819
        %v889 = vpop.permute.xlu0 %888
        %892 = vset.pattern.permute.xlu0 0
        %893 = vperm.xlu0 %892, %v820
        %v894 = vpop.permute.xlu0 %893
        %897 = vset.pattern.permute.xlu0 0
        %898 = vperm.xlu0 %897, %v821
        %v899 = vpop.permute.xlu0 %898
        %902 = vset.pattern.permute.xlu0 0
        %903 = vperm.xlu0 %902, %v822
        %v904 = vpop.permute.xlu0 %903
        %907 = vset.pattern.permute.xlu0 0
        %908 = vperm.xlu0 %907, %v823
        %v909 = vpop.permute.xlu0 %908
        %912 = vset.pattern.permute.xlu0 0
        %913 = vperm.xlu0 %912, %v824
        %v914 = vpop.permute.xlu0 %913
        %917 = vset.pattern.permute.xlu0 0
        %918 = vperm.xlu0 %917, %v825
        %v919 = vpop.permute.xlu0 %918
        %v940 = vunpack.c.l.b16 %v783
        %v941 = vunpack.c.l.b16 %v784
        %v942 = vunpack.c.l.b16 %v785
        %v943 = vunpack.c.l.b16 %v786
        %v944 = vunpack.c.l.b16 %v787
        %v945 = vunpack.c.l.b16 %v788
        %v946 = vunpack.c.l.b16 %v789
        %v947 = vunpack.c.l.b16 %v790
        %v948 = vunpack.c.l.b16 %v791
        %v949 = vunpack.c.l.b16 %v792
        %v950 = vunpack.c.l.b16 %v793
        %v951 = vunpack.c.l.b16 %v794
        %v952 = vunpack.c.l.b16 %v795
        %v953 = vunpack.c.l.b16 %v796
        %v954 = vunpack.c.l.b16 %v797
        %v955 = vunpack.c.l.b16 %v798
        %v956 = vunpack.c.l.b16 %v799
        %v957 = vunpack.c.l.b16 %v800
        %v958 = vunpack.c.l.b16 %v801
        %v959 = vpack.c.b16 %v941, %v940
        %v960 = vpack.c.b16 %v943, %v942
        %v961 = vpack.c.b16 %v945, %v944
        %v962 = vpack.c.b16 %v947, %v946
        %v963 = vpack.c.b16 %v949, %v948
        %v964 = vpack.c.b16 %v951, %v950
        %v965 = vpack.c.b16 %v953, %v952
        %v966 = vpack.c.b16 %v955, %v954
        %v967 = vpack.c.b16 %v957, %v956
        %v968 = vpack.c.b16 %v958, %v958
        %vm969 = vcmask 588800
        %v971 = vsel %vm969, %v959, 0
        %v974 = vsel %vm969, %v960, 0
        %v977 = vsel %vm969, %v961, 0
        %v980 = vsel %vm969, %v962, 0
        %v983 = vsel %vm969, %v963, 0
        %v986 = vsel %vm969, %v964, 0
        %v989 = vsel %vm969, %v965, 0
        %v992 = vsel %vm969, %v966, 0
        %v995 = vsel %vm969, %v967, 0
        %v998 = vsel %vm969, %v968, 0
        %v1001 = vsel %vm518, %v806, 0
        %1003 = vmatprep.subr.bf16.mxu0 0
        %1004 = vmatpush1.bf16.msra.mxu0 %v802
        %1005 = vmatprep.subr.bf16.mxu0 0
        %1006 = vmatpush1.bf16.msra.mxu0 %v803
        %1007 = vmatprep.subr.bf16.mxu0 0
        %1008 = vmatpush1.bf16.msra.mxu0 %v804
        %1009 = vmatprep.subr.bf16.mxu0 0
        %1010 = vmatpush1.bf16.msra.mxu0 %v805
        %1011 = vmatprep.subr.bf16.mxu0 0
        %1012 = vmatpush1.bf16.msra.mxu0 %v1001
        %1013 = vmatprep.subr.bf16.mxu0 0
        %1014 = vmatpush1.bf16.msra.mxu0 0
        %1015 = vmatprep.subr.bf16.mxu0 0
        %1016 = vmatpush1.bf16.msra.mxu0 0
        %1017 = vmatprep.subr.bf16.mxu0 0
        %1018 = vmatpush1.bf16.msra.mxu0 0
        %1019 = vmatprep.subr.bf16.mxu0 0
        %1020 = vmatpush1.bf16.msra.mxu0 0
        %1021 = vmatprep.subr.bf16.mxu0 0
        %1022 = vmatpush1.bf16.msra.mxu0 0
        %1023 = vmatprep.subr.bf16.mxu0 0
        %1024 = vmatpush1.bf16.msra.mxu0 0
        %1025 = vmatprep.subr.bf16.mxu0 0
        %1026 = vmatpush1.bf16.msra.mxu0 0
        %1027 = vmatprep.subr.bf16.mxu0 0
        %1028 = vmatpush1.bf16.msra.mxu0 0
        %1029 = vmatprep.subr.bf16.mxu0 0
        %1030 = vmatpush1.bf16.msra.mxu0 0
        %1031 = vmatprep.subr.bf16.mxu0 0
        %1032 = vmatpush1.bf16.msra.mxu0 0
        %1033 = vmatprep.subr.bf16.mxu0 0
        %1034 = vmatpush1.bf16.msra.mxu0 0
        %1035 = vmatprep.mubr.bf16.mxu0 0
        %1036 = vmatmul.mubr.bf16.gmra.mrb[0].mxu0 %v971
        %v1037 = vpop.f32.mrb[0].mxu0
        %v1038 = vadd.f32 %v829, %v1037
        %v1039 = vpop.f32.mrb[0].mxu0
        %v1040 = vpop.f32.mrb[0].mxu0
        %v1041 = vadd.f32 %v834, %v1040
        %v1042 = vpop.f32.mrb[0].mxu0
        %1043 = vmatprep.mubr.bf16.mxu0 0
        %1044 = vmatmul.mubr.bf16.gmra.mrb[0].mxu0 %v974
        %v1045 = vpop.f32.mrb[0].mxu0
        %v1046 = vadd.f32 %v839, %v1045
        %v1047 = vpop.f32.mrb[0].mxu0
        %v1048 = vpop.f32.mrb[0].mxu0
        %v1049 = vadd.f32 %v844, %v1048
        %v1050 = vpop.f32.mrb[0].mxu0
        %1051 = vmatprep.mubr.bf16.mxu0 0
        %1052 = vmatmul.mubr.bf16.gmra.mrb[0].mxu0 %v977
        %v1053 = vpop.f32.mrb[0].mxu0
        %v1054 = vadd.f32 %v849, %v1053
        %v1055 = vpop.f32.mrb[0].mxu0
        %v1056 = vpop.f32.mrb[0].mxu0
        %v1057 = vadd.f32 %v854, %v1056
        %v1058 = vpop.f32.mrb[0].mxu0
        %1059 = vmatprep.mubr.bf16.mxu0 0
        %1060 = vmatmul.mubr.bf16.gmra.mrb[0].mxu0 %v980
        %v1061 = vpop.f32.mrb[0].mxu0
        %v1062 = vadd.f32 %v859, %v1061
        %v1063 = vpop.f32.mrb[0].mxu0
        %v1064 = vpop.f32.mrb[0].mxu0
        %v1065 = vadd.f32 %v864, %v1064
        %v1066 = vpop.f32.mrb[0].mxu0
        %1067 = vmatprep.mubr.bf16.mxu0 0
        %1068 = vmatmul.mubr.bf16.gmra.mrb[0].mxu0 %v983
        %v1069 = vpop.f32.mrb[0].mxu0
        %v1070 = vadd.f32 %v869, %v1069
        %v1071 = vpop.f32.mrb[0].mxu0
        %v1072 = vpop.f32.mrb[0].mxu0
        %v1073 = vadd.f32 %v874, %v1072
        %v1074 = vpop.f32.mrb[0].mxu0
        %1075 = vmatprep.mubr.bf16.mxu0 0
        %1076 = vmatmul.mubr.bf16.gmra.mrb[0].mxu0 %v986
        %v1077 = vpop.f32.mrb[0].mxu0
        %v1078 = vadd.f32 %v879, %v1077
        %v1079 = vpop.f32.mrb[0].mxu0
        %v1080 = vpop.f32.mrb[0].mxu0
        %v1081 = vadd.f32 %v884, %v1080
        %v1082 = vpop.f32.mrb[0].mxu0
        %1083 = vmatprep.mubr.bf16.mxu0 0
        %1084 = vmatmul.mubr.bf16.gmra.mrb[0].mxu0 %v989
        %v1085 = vpop.f32.mrb[0].mxu0
        %v1086 = vadd.f32 %v889, %v1085
        %v1087 = vpop.f32.mrb[0].mxu0
        %v1088 = vpop.f32.mrb[0].mxu0
        %v1089 = vadd.f32 %v894, %v1088
        %v1090 = vpop.f32.mrb[0].mxu0
        %1091 = vmatprep.mubr.bf16.mxu0 0
        %1092 = vmatmul.mubr.bf16.gmra.mrb[0].mxu0 %v992
        %v1093 = vpop.f32.mrb[0].mxu0
        %v1094 = vadd.f32 %v899, %v1093
        %v1095 = vpop.f32.mrb[0].mxu0
        %v1096 = vpop.f32.mrb[0].mxu0
        %v1097 = vadd.f32 %v904, %v1096
        %v1098 = vpop.f32.mrb[0].mxu0
        %1099 = vmatprep.mubr.bf16.mxu0 0
        %1100 = vmatmul.mubr.bf16.gmra.mrb[0].mxu0 %v995
        %v1101 = vpop.f32.mrb[0].mxu0
        %v1102 = vadd.f32 %v909, %v1101
        %v1103 = vpop.f32.mrb[0].mxu0
        %v1104 = vpop.f32.mrb[0].mxu0
        %v1105 = vadd.f32 %v914, %v1104
        %v1106 = vpop.f32.mrb[0].mxu0
        %1107 = vmatprep.mubr.bf16.mxu0 0
        %1108 = vmatmul.mubr.bf16.gmra.mrb[0].mxu0 %v998
        %v1109 = vpop.f32.mrb[0].mxu0
        %v1110 = vadd.f32 %v919, %v1109
        %v1111 = vpop.f32.mrb[0].mxu0
        %v1112 = vpop.f32.mrb[0].mxu0
        %v1113 = vpop.f32.mrb[0].mxu0
        %1114 = vdwg.mxu0
        %v1115 = vmax.f32 %v1038, 0.0
        %v1116 = vmax.f32 %v1041, 0.0
        %v1117 = vmax.f32 %v1046, 0.0
        %v1118 = vmax.f32 %v1049, 0.0
        %v1119 = vmax.f32 %v1054, 0.0
        %v1120 = vmax.f32 %v1057, 0.0
        %v1121 = vmax.f32 %v1062, 0.0
        %v1122 = vmax.f32 %v1065, 0.0
        %v1123 = vmax.f32 %v1070, 0.0
        %v1124 = vmax.f32 %v1073, 0.0
        %v1125 = vmax.f32 %v1078, 0.0
        %v1126 = vmax.f32 %v1081, 0.0
        %v1127 = vmax.f32 %v1086, 0.0
        %v1128 = vmax.f32 %v1089, 0.0
        %v1129 = vmax.f32 %v1094, 0.0
        %v1130 = vmax.f32 %v1097, 0.0
        %v1131 = vmax.f32 %v1102, 0.0
        %v1132 = vmax.f32 %v1105, 0.0
        %v1133 = vmax.f32 %v1110, 0.0
        %v1134 = vld [vmem:[%s7] sm:$0xff]
        %v1135 = vld [vmem:[%s7 + $0x8] sm:$0xff]
        %v1136 = vld [vmem:[%s7 + $0x10] sm:$0xff]
        %v1137 = vld [vmem:[%s7 + $0x18] sm:$0xff]
        %v1138 = vld [vmem:[%s7 + $0x20] sm:$0xff]
        %v1139 = vld [vmem:[%s7 + $0x28] sm:$0xff]
        %v1140 = vld [vmem:[%s7 + $0x30] sm:$0xff]
        %v1141 = vld [vmem:[%s7 + $0x38] sm:$0xff]
        %v1142 = vld [vmem:[%s7 + $0x40] sm:$0xff]
        %v1143 = vld [vmem:[%s7 + $0x48] sm:$0xff]
        %v1144 = vld [vmem:[%s7 + $0x50] sm:$0xff]
        %v1145 = vld [vmem:[%s7 + $0x58] sm:$0xff]
        %v1146 = vld [vmem:[%s7 + $0x60] sm:$0xff]
        %v1147 = vpack.c.bf16 %v1116, %v1115
        %v1148 = vpack.c.bf16 %v1118, %v1117
        %v1149 = vpack.c.bf16 %v1120, %v1119
        %v1150 = vpack.c.bf16 %v1122, %v1121
        %v1151 = vpack.c.bf16 %v1124, %v1123
        %v1152 = vpack.c.bf16 %v1126, %v1125
        %v1153 = vpack.c.bf16 %v1128, %v1127
        %v1154 = vpack.c.bf16 %v1130, %v1129
        %v1155 = vpack.c.bf16 %v1132, %v1131
        %v1156 = vpack.c.bf16 %v1133, %v1133
        %v1157 = vld [vmem:[%s8] sm:$0xff]
        %v1158 = vld [vmem:[%s8 + $0x8] sm:$0xff]
        %v1159 = vld [vmem:[%s8 + $0x10] sm:$0xff]
        %v1160 = vld [vmem:[%s8 + $0x18] sm:$0xff]
        %v1161 = vld [vmem:[%s8 + $0x20] sm:$0xff]
        %v1162 = vld [vmem:[%s8 + $0x28] sm:$0xff]
        %v1163 = vld [vmem:[%s8 + $0x30] sm:$0xff]
        %v1164 = vld [vmem:[%s8 + $0x38] sm:$0xff]
        %v1165 = vld [vmem:[%s8 + $0x40] sm:$0xff]
        %v1166 = vld [vmem:[%s8 + $0x48] sm:$0xff]
        %v1167 = vld [vmem:[%s8 + $0x50] sm:$0xff]
        %v1168 = vld [vmem:[%s8 + $0x58] sm:$0xff]
        %v1169 = vld [vmem:[%s8 + $0x60] sm:$0xff]
        %1171 = vset.pattern.permute.xlu0 0
        %1172 = vperm.xlu0 %1171, %v1157
        %v1173 = vpop.permute.xlu0 %1172
        %1176 = vset.pattern.permute.xlu0 0
        %1177 = vperm.xlu0 %1176, %v1158
        %v1178 = vpop.permute.xlu0 %1177
        %1181 = vset.pattern.permute.xlu0 0
        %1182 = vperm.xlu0 %1181, %v1159
        %v1183 = vpop.permute.xlu0 %1182
        %1186 = vset.pattern.permute.xlu0 0
        %1187 = vperm.xlu0 %1186, %v1160
        %v1188 = vpop.permute.xlu0 %1187
        %1191 = vset.pattern.permute.xlu0 0
        %1192 = vperm.xlu0 %1191, %v1161
        %v1193 = vpop.permute.xlu0 %1192
        %1196 = vset.pattern.permute.xlu0 0
        %1197 = vperm.xlu0 %1196, %v1162
        %v1198 = vpop.permute.xlu0 %1197
        %1201 = vset.pattern.permute.xlu0 0
        %1202 = vperm.xlu0 %1201, %v1163
        %v1203 = vpop.permute.xlu0 %1202
        %1206 = vset.pattern.permute.xlu0 0
        %1207 = vperm.xlu0 %1206, %v1164
        %v1208 = vpop.permute.xlu0 %1207
        %1211 = vset.pattern.permute.xlu0 0
        %1212 = vperm.xlu0 %1211, %v1165
        %v1213 = vpop.permute.xlu0 %1212
        %1216 = vset.pattern.permute.xlu0 0
        %1217 = vperm.xlu0 %1216, %v1166
        %v1218 = vpop.permute.xlu0 %1217
        %1221 = vset.pattern.permute.xlu0 0
        %1222 = vperm.xlu0 %1221, %v1167
        %v1223 = vpop.permute.xlu0 %1222
        %1226 = vset.pattern.permute.xlu0 0
        %1227 = vperm.xlu0 %1226, %v1168
        %v1228 = vpop.permute.xlu0 %1227
        %1231 = vset.pattern.permute.xlu0 0
        %1232 = vperm.xlu0 %1231, %v1169
        %v1233 = vpop.permute.xlu0 %1232
        %v1248 = vunpack.c.l.b16 %v1134
        %v1249 = vunpack.c.h.b16 %v1134
        %v1250 = vunpack.c.l.b16 %v1135
        %v1251 = vunpack.c.h.b16 %v1135
        %v1252 = vunpack.c.l.b16 %v1136
        %v1253 = vunpack.c.h.b16 %v1136
        %v1254 = vunpack.c.l.b16 %v1137
        %v1255 = vunpack.c.h.b16 %v1137
        %v1256 = vunpack.c.l.b16 %v1138
        %v1257 = vunpack.c.h.b16 %v1138
        %v1258 = vunpack.c.l.b16 %v1139
        %v1259 = vunpack.c.h.b16 %v1139
        %v1260 = vunpack.c.l.b16 %v1140
        %v1261 = vunpack.c.h.b16 %v1140
        %v1262 = vunpack.c.l.b16 %v1141
        %v1263 = vunpack.c.h.b16 %v1141
        %v1264 = vunpack.c.l.b16 %v1142
        %v1265 = vunpack.c.h.b16 %v1142
        %v1266 = vunpack.c.l.b16 %v1143
        %v1267 = vunpack.c.h.b16 %v1143
        %v1268 = vunpack.c.l.b16 %v1144
        %v1269 = vunpack.c.h.b16 %v1144
        %v1270 = vunpack.c.l.b16 %v1145
        %v1271 = vunpack.c.h.b16 %v1145
        %v1272 = vunpack.c.l.b16 %v1146
        %v1273 = vunpack.c.h.b16 %v1146
        %v1274 = vpack.c.b16 %v1250, %v1248
        %v1275 = vpack.c.b16 %v1251, %v1249
        %v1276 = vpack.c.b16 %v1254, %v1252
        %v1277 = vpack.c.b16 %v1255, %v1253
        %v1278 = vpack.c.b16 %v1258, %v1256
        %v1279 = vpack.c.b16 %v1259, %v1257
        %v1280 = vpack.c.b16 %v1262, %v1260
        %v1281 = vpack.c.b16 %v1263, %v1261
        %v1282 = vpack.c.b16 %v1266, %v1264
        %v1283 = vpack.c.b16 %v1267, %v1265
        %v1284 = vpack.c.b16 %v1270, %v1268
        %v1285 = vpack.c.b16 %v1271, %v1269
        %v1286 = vpack.c.b16 %v1272, %v1272
        %v1287 = vpack.c.b16 %v1273, %v1273
        %vm1295 = vcmask 195584
        %v1297 = vsel %vm1295, %v1275, 0
        %v1300 = vsel %vm1295, %v1277, 0
        %v1303 = vsel %vm1295, %v1279, 0
        %v1306 = vsel %vm1295, %v1281, 0
        %v1309 = vsel %vm1295, %v1283, 0
        %v1312 = vsel %vm1295, %v1285, 0
        %v1315 = vsel %vm1295, %v1287, 0
        %v1318 = vsel %vm518, %v1156, 0
        %1320 = vmatprep.subr.bf16.mxu0 0
        %1321 = vmatpush1.bf16.msra.mxu0 %v1147
        %1322 = vmatprep.subr.bf16.mxu0 0
        %1323 = vmatpush1.bf16.msra.mxu0 %v1148
        %1324 = vmatprep.subr.bf16.mxu0 0
        %1325 = vmatpush1.bf16.msra.mxu0 %v1149
        %1326 = vmatprep.subr.bf16.mxu0 0
        %1327 = vmatpush1.bf16.msra.mxu0 %v1150
        %1328 = vmatprep.subr.bf16.mxu0 0
        %1329 = vmatpush1.bf16.msra.mxu0 %v1151
        %1330 = vmatprep.subr.bf16.mxu0 0
        %1331 = vmatpush1.bf16.msra.mxu0 %v1152
        %1332 = vmatprep.subr.bf16.mxu0 0
        %1333 = vmatpush1.bf16.msra.mxu0 %v1153
        %1334 = vmatprep.subr.bf16.mxu0 0
        %1335 = vmatpush1.bf16.msra.mxu0 %v1154
        %1336 = vmatprep.subr.bf16.mxu0 0
        %1337 = vmatpush1.bf16.msra.mxu0 %v1155
        %1338 = vmatprep.subr.bf16.mxu0 0
        %1339 = vmatpush1.bf16.msra.mxu0 %v1318
        %1340 = vmatprep.subr.bf16.mxu0 0
        %1341 = vmatpush1.bf16.msra.mxu0 0
        %1342 = vmatprep.subr.bf16.mxu0 0
        %1343 = vmatpush1.bf16.msra.mxu0 0
        %1344 = vmatprep.subr.bf16.mxu0 0
        %1345 = vmatpush1.bf16.msra.mxu0 0
        %1346 = vmatprep.subr.bf16.mxu0 0
        %1347 = vmatpush1.bf16.msra.mxu0 0
        %1348 = vmatprep.subr.bf16.mxu0 0
        %1349 = vmatpush1.bf16.msra.mxu0 0
        %1350 = vmatprep.subr.bf16.mxu0 0
        %1351 = vmatpush1.bf16.msra.mxu0 0
        %1352 = vmatprep.mubr.bf16.mxu0 %v1297
        %1353 = vmatmul.mubr.bf16.gmra.mrb[0].mxu0 %v1274
        %v1354 = vpop.f32.mrb[0].mxu0
        %v1355 = vadd.f32 %v1173, %v1354
        %v1356 = vpop.f32.mrb[0].mxu0
        %v1357 = vpop.f32.mrb[0].mxu0
        %v1358 = vadd.f32 %v1178, %v1357
        %v1359 = vpop.f32.mrb[0].mxu0
        %1360 = vmatprep.mubr.bf16.mxu0 %v1300
        %1361 = vmatmul.mubr.bf16.gmra.mrb[0].mxu0 %v1276
        %v1362 = vpop.f32.mrb[0].mxu0
        %v1363 = vadd.f32 %v1183, %v1362
        %v1364 = vpop.f32.mrb[0].mxu0
        %v1365 = vpop.f32.mrb[0].mxu0
        %v1366 = vadd.f32 %v1188, %v1365
        %v1367 = vpop.f32.mrb[0].mxu0
        %1368 = vmatprep.mubr.bf16.mxu0 %v1303
        %1369 = vmatmul.mubr.bf16.gmra.mrb[0].mxu0 %v1278
        %v1370 = vpop.f32.mrb[0].mxu0
        %v1371 = vadd.f32 %v1193, %v1370
        %v1372 = vpop.f32.mrb[0].mxu0
        %v1373 = vpop.f32.mrb[0].mxu0
        %v1374 = vadd.f32 %v1198, %v1373
        %v1375 = vpop.f32.mrb[0].mxu0
        %1376 = vmatprep.mubr.bf16.mxu0 %v1306
        %1377 = vmatmul.mubr.bf16.gmra.mrb[0].mxu0 %v1280
        %v1378 = vpop.f32.mrb[0].mxu0
        %v1379 = vadd.f32 %v1203, %v1378
        %v1380 = vpop.f32.mrb[0].mxu0
        %v1381 = vpop.f32.mrb[0].mxu0
        %v1382 = vadd.f32 %v1208, %v1381
        %v1383 = vpop.f32.mrb[0].mxu0
        %1384 = vmatprep.mubr.bf16.mxu0 %v1309
        %1385 = vmatmul.mubr.bf16.gmra.mrb[0].mxu0 %v1282
        %v1386 = vpop.f32.mrb[0].mxu0
        %v1387 = vadd.f32 %v1213, %v1386
        %v1388 = vpop.f32.mrb[0].mxu0
        %v1389 = vpop.f32.mrb[0].mxu0
        %v1390 = vadd.f32 %v1218, %v1389
        %v1391 = vpop.f32.mrb[0].mxu0
        %1392 = vmatprep.mubr.bf16.mxu0 %v1312
        %1393 = vmatmul.mubr.bf16.gmra.mrb[0].mxu0 %v1284
        %v1394 = vpop.f32.mrb[0].mxu0
        %v1395 = vadd.f32 %v1223, %v1394
        %v1396 = vpop.f32.mrb[0].mxu0
        %v1397 = vpop.f32.mrb[0].mxu0
        %v1398 = vadd.f32 %v1228, %v1397
        %v1399 = vpop.f32.mrb[0].mxu0
        %1400 = vmatprep.mubr.bf16.mxu0 %v1315
        %1401 = vmatmul.mubr.bf16.gmra.mrb[0].mxu0 %v1286
        %v1402 = vpop.f32.mrb[0].mxu0
        %v1403 = vadd.f32 %v1233, %v1402
        %v1404 = vpop.f32.mrb[0].mxu0
        %v1405 = vpop.f32.mrb[0].mxu0
        %v1406 = vpop.f32.mrb[0].mxu0
        %1407 = vdwg.mxu0
        %v1408 = vmax.f32 %v1355, 0.0
        %v1409 = vmax.f32 %v1358, 0.0
        %v1410 = vmax.f32 %v1363, 0.0
        %v1411 = vmax.f32 %v1366, 0.0
        %v1412 = vmax.f32 %v1371, 0.0
        %v1413 = vmax.f32 %v1374, 0.0
        %v1414 = vmax.f32 %v1379, 0.0
        %v1415 = vmax.f32 %v1382, 0.0
        %v1416 = vmax.f32 %v1387, 0.0
        %v1417 = vmax.f32 %v1390, 0.0
        %v1418 = vmax.f32 %v1395, 0.0
        %v1419 = vmax.f32 %v1398, 0.0
        %v1420 = vmax.f32 %v1403, 0.0
        %v1421 = vld [vmem:[%s9] sm:$0xf]
        %v1422 = vld [vmem:[%s9 + $0x4] sm:$0xf]
        %v1423 = vld [vmem:[%s9 + $0x8] sm:$0xf]
        %v1424 = vld [vmem:[%s9 + $0xc] sm:$0xf]
        %v1425 = vld [vmem:[%s9 + $0x10] sm:$0xf]
        %v1426 = vld [vmem:[%s9 + $0x14] sm:$0xf]
        %v1427 = vld [vmem:[%s9 + $0x18] sm:$0xf]
        %v1428 = vpack.c.bf16 %v1409, %v1408
        %v1429 = vpack.c.bf16 %v1411, %v1410
        %v1430 = vpack.c.bf16 %v1413, %v1412
        %v1431 = vpack.c.bf16 %v1415, %v1414
        %v1432 = vpack.c.bf16 %v1417, %v1416
        %v1433 = vpack.c.bf16 %v1419, %v1418
        %v1434 = vpack.c.bf16 %v1420, %v1420
        %v1435 = vld [vmem:[%s10] sm:$0xff]
        %v1436 = vld [vmem:[%s10 + $0x8] sm:$0xff]
        %v1437 = vld [vmem:[%s10 + $0x10] sm:$0xff]
        %v1438 = vld [vmem:[%s10 + $0x18] sm:$0xff]
        %v1439 = vld [vmem:[%s10 + $0x20] sm:$0xff]
        %v1440 = vld [vmem:[%s10 + $0x28] sm:$0xff]
        %v1441 = vld [vmem:[%s10 + $0x30] sm:$0xff]
        %1443 = vset.pattern.permute.xlu0 0
        %1444 = vperm.xlu0 %1443, %v1435
        %v1445 = vpop.permute.xlu0 %1444
        %1448 = vset.pattern.permute.xlu0 0
        %1449 = vperm.xlu0 %1448, %v1436
        %v1450 = vpop.permute.xlu0 %1449
        %1453 = vset.pattern.permute.xlu0 0
        %1454 = vperm.xlu0 %1453, %v1437
        %v1455 = vpop.permute.xlu0 %1454
        %1458 = vset.pattern.permute.xlu0 0
        %1459 = vperm.xlu0 %1458, %v1438
        %v1460 = vpop.permute.xlu0 %1459
        %1463 = vset.pattern.permute.xlu0 0
        %1464 = vperm.xlu0 %1463, %v1439
        %v1465 = vpop.permute.xlu0 %1464
        %1468 = vset.pattern.permute.xlu0 0
        %1469 = vperm.xlu0 %1468, %v1440
        %v1470 = vpop.permute.xlu0 %1469
        %1473 = vset.pattern.permute.xlu0 0
        %1474 = vperm.xlu0 %1473, %v1441
        %v1475 = vpop.permute.xlu0 %1474
        %v1484 = vunpack.c.l.b16 %v1421
        %v1485 = vunpack.c.l.b16 %v1422
        %v1486 = vunpack.c.l.b16 %v1423
        %v1487 = vunpack.c.l.b16 %v1424
        %v1488 = vunpack.c.l.b16 %v1425
        %v1489 = vunpack.c.l.b16 %v1426
        %v1490 = vunpack.c.l.b16 %v1427
        %v1491 = vpack.c.b16 %v1485, %v1484
        %v1492 = vpack.c.b16 %v1487, %v1486
        %v1493 = vpack.c.b16 %v1489, %v1488
        %v1494 = vpack.c.b16 %v1490, %v1490
        %vm1495 = vcmask 850944
        %v1497 = vsel %vm1495, %v1491, 0
        %v1500 = vsel %vm1495, %v1492, 0
        %v1503 = vsel %vm1495, %v1493, 0
        %v1506 = vsel %vm1495, %v1494, 0
        %v1509 = vsel %vm518, %v1434, 0
        %1511 = vmatprep.subr.bf16.mxu0 0
        %1512 = vmatpush1.bf16.msra.mxu0 %v1428
        %1513 = vmatprep.subr.bf16.mxu0 0
        %1514 = vmatpush1.bf16.msra.mxu0 %v1429
        %1515 = vmatprep.subr.bf16.mxu0 0
        %1516 = vmatpush1.bf16.msra.mxu0 %v1430
        %1517 = vmatprep.subr.bf16.mxu0 0
        %1518 = vmatpush1.bf16.msra.mxu0 %v1431
        %1519 = vmatprep.subr.bf16.mxu0 0
        %1520 = vmatpush1.bf16.msra.mxu0 %v1432
        %1521 = vmatprep.subr.bf16.mxu0 0
        %1522 = vmatpush1.bf16.msra.mxu0 %v1433
        %1523 = vmatprep.subr.bf16.mxu0 0
        %1524 = vmatpush1.bf16.msra.mxu0 %v1509
        %1525 = vmatprep.subr.bf16.mxu0 0
        %1526 = vmatpush1.bf16.msra.mxu0 0
        %1527 = vmatprep.subr.bf16.mxu0 0
        %1528 = vmatpush1.bf16.msra.mxu0 0
        %1529 = vmatprep.subr.bf16.mxu0 0
        %1530 = vmatpush1.bf16.msra.mxu0 0
        %1531 = vmatprep.subr.bf16.mxu0 0
        %1532 = vmatpush1.bf16.msra.mxu0 0
        %1533 = vmatprep.subr.bf16.mxu0 0
        %1534 = vmatpush1.bf16.msra.mxu0 0
        %1535 = vmatprep.subr.bf16.mxu0 0
        %1536 = vmatpush1.bf16.msra.mxu0 0
        %1537 = vmatprep.subr.bf16.mxu0 0
        %1538 = vmatpush1.bf16.msra.mxu0 0
        %1539 = vmatprep.subr.bf16.mxu0 0
        %1540 = vmatpush1.bf16.msra.mxu0 0
        %1541 = vmatprep.subr.bf16.mxu0 0
        %1542 = vmatpush1.bf16.msra.mxu0 0
        %1543 = vmatprep.mubr.bf16.mxu0 0
        %1544 = vmatmul.mubr.bf16.gmra.mrb[0].mxu0 %v1497
        %v1545 = vpop.f32.mrb[0].mxu0
        %v1546 = vadd.f32 %v1445, %v1545
        %v1547 = vpop.f32.mrb[0].mxu0
        %v1548 = vpop.f32.mrb[0].mxu0
        %v1549 = vadd.f32 %v1450, %v1548
        %v1550 = vpop.f32.mrb[0].mxu0
        %1551 = vmatprep.mubr.bf16.mxu0 0
        %1552 = vmatmul.mubr.bf16.gmra.mrb[0].mxu0 %v1500
        %v1553 = vpop.f32.mrb[0].mxu0
        %v1554 = vadd.f32 %v1455, %v1553
        %v1555 = vpop.f32.mrb[0].mxu0
        %v1556 = vpop.f32.mrb[0].mxu0
        %v1557 = vadd.f32 %v1460, %v1556
        %v1558 = vpop.f32.mrb[0].mxu0
        %1559 = vmatprep.mubr.bf16.mxu0 0
        %1560 = vmatmul.mubr.bf16.gmra.mrb[0].mxu0 %v1503
        %v1561 = vpop.f32.mrb[0].mxu0
        %v1562 = vadd.f32 %v1465, %v1561
        %v1563 = vpop.f32.mrb[0].mxu0
        %v1564 = vpop.f32.mrb[0].mxu0
        %v1565 = vadd.f32 %v1470, %v1564
        %v1566 = vpop.f32.mrb[0].mxu0
        %1567 = vmatprep.mubr.bf16.mxu0 0
        %1568 = vmatmul.mubr.bf16.gmra.mrb[0].mxu0 %v1506
        %v1569 = vpop.f32.mrb[0].mxu0
        %v1570 = vadd.f32 %v1475, %v1569
        %v1571 = vpop.f32.mrb[0].mxu0
        %v1572 = vpop.f32.mrb[0].mxu0
        %v1573 = vpop.f32.mrb[0].mxu0
        %1574 = vdwg.mxu0
        %v1575 = vmax.f32 %v1546, 0.0
        %v1576 = vmax.f32 %v1549, 0.0
        %v1577 = vmax.f32 %v1554, 0.0
        %v1578 = vmax.f32 %v1557, 0.0
        %v1579 = vmax.f32 %v1562, 0.0
        %v1580 = vmax.f32 %v1565, 0.0
        %v1581 = vmax.f32 %v1570, 0.0
        %v1582 = vld [vmem:[%s11] sm:$0xf]
        %v1583 = vpack.c.bf16 %v1576, %v1575
        %v1584 = vpack.c.bf16 %v1578, %v1577
        %v1585 = vpack.c.bf16 %v1580, %v1579
        %v1586 = vpack.c.bf16 %v1581, %v1581
        %v1587 = vld [vmem:[%s12] sm:$0xff]
        %1589 = vset.pattern.permute.xlu0 0
        %1590 = vperm.xlu0 %1589, %v1587
        %v1591 = vpop.permute.xlu0 %1590
        %v1594 = vsel %vm683, %v1582, 0
        %v1597 = vsel %vm518, %v1586, 0
        %1599 = vmatprep.subr.bf16.mxu0 0
        %1600 = vmatpush1.bf16.msra.mxu0 %v1583
        %1601 = vmatprep.subr.bf16.mxu0 0
        %1602 = vmatpush1.bf16.msra.mxu0 %v1584
        %1603 = vmatprep.subr.bf16.mxu0 0
        %1604 = vmatpush1.bf16.msra.mxu0 %v1585
        %1605 = vmatprep.subr.bf16.mxu0 0
        %1606 = vmatpush1.bf16.msra.mxu0 %v1597
        %1607 = vmatprep.subr.bf16.mxu0 0
        %1608 = vmatpush1.bf16.msra.mxu0 0
        %1609 = vmatprep.subr.bf16.mxu0 0
        %1610 = vmatpush1.bf16.msra.mxu0 0
        %1611 = vmatprep.subr.bf16.mxu0 0
        %1612 = vmatpush1.bf16.msra.mxu0 0
        %1613 = vmatprep.subr.bf16.mxu0 0
        %1614 = vmatpush1.bf16.msra.mxu0 0
        %1615 = vmatprep.subr.bf16.mxu0 0
        %1616 = vmatpush1.bf16.msra.mxu0 0
        %1617 = vmatprep.subr.bf16.mxu0 0
        %1618 = vmatpush1.bf16.msra.mxu0 0
        %1619 = vmatprep.subr.bf16.mxu0 0
        %1620 = vmatpush1.bf16.msra.mxu0 0
        %1621 = vmatprep.subr.bf16.mxu0 0
        %1622 = vmatpush1.bf16.msra.mxu0 0
        %1623 = vmatprep.subr.bf16.mxu0 0
        %1624 = vmatpush1.bf16.msra.mxu0 0
        %1625 = vmatprep.subr.bf16.mxu0 0
        %1626 = vmatpush1.bf16.msra.mxu0 0
        %1627 = vmatprep.subr.bf16.mxu0 0
        %1628 = vmatpush1.bf16.msra.mxu0 0
        %1629 = vmatprep.subr.bf16.mxu0 0
        %1630 = vmatpush1.bf16.msra.mxu0 0
        %1631 = vmatprep.mubr.bf16.mxu0 0
        %1632 = vmatmul.mubr.bf16.gmra.mrb[0].mxu0 %v1594
        %v1633 = vpop.f32.mrb[0].mxu0
        %v1634 = vadd.f32 %v1591, %v1633
        %v1635 = vpop.f32.mrb[0].mxu0
        %v1636 = vpop.f32.mrb[0].mxu0
        %v1637 = vpop.f32.mrb[0].mxu0
        %1638 = vdwg.mxu0
        %v1639 = vxor.u32 %v1634, 2147483648
        %v1640 = vmul.f32 %v1639, 1.442695
        %v1641 = vpow.pop %v1640
        %v1642 = vadd.f32 %v1641, 1.0
        %v1643 = vrcp.pop %v1642
        %v1644 = vmul.f32 1.0, %v1643
        %1645 = vst [vmem:[%s431] sm:$0xff] %v1644
        %s1646 = sand.u32 %s313, 1
        %s1647 = scalar_lea.sflag [#allocation3], %s1646
        %s1648 = sand.u32 %s313, 1
        %s1649 = smul.addr %s1648, 8
        %s1650 = scalar_lea.vmem [#allocation2], %s1649
        // Predicated region
        $region73: #{tpu_custom_call.1} parent=71 // pred_check
          %p1651 = pneg %p323
        $region74: #{tpu_custom_call.1} parent=71 // pred_check_branch
          %1653 = sbr.rel (%p1651) target = $region76
        $region75: #{tpu_custom_call.1} parent=71 // pred_region
          %s1655 = ssub.s32 128, 128
          %1656 = vsyncadd %s1647, %s1655
          %s1657 = smul.addr %s27, 128
          %s1658 = scalar_lea.hbm %s13, %s1657
          %s1660 = sshll.u32 %s1650, 4
          %s1661 = int_to_ptr.vmem [resolvable:$true] %s1660
          %1663 = dma.vmem_to_hbm [thread:$0]  %s1661, 128, %s1658, %s1647
        $region76: #{tpu_custom_call.1} parent=71 // pred_fallthru
          _
      $region72: #{tpu_custom_call.1} parent=5 // pred_fallthru
        _
      %p1664 = scmp.le.s32.totalorder 2, %s22
      // Predicated region
      $region77: #{tpu_custom_call.1} parent=5 // pred_check
        %p1665 = pneg %p1664
      $region78: #{tpu_custom_call.1} parent=5 // pred_check_branch
        %1667 = sbr.rel (%p1665) target = $region80
      $region79: #{tpu_custom_call.1} parent=5 // pred_region
        %s1668 = ssub.s32 %s22, 2
        // Predicated region
        $region81: #{tpu_custom_call.1} parent=79 // pred_check
          %p1669 = pneg %p329
        $region82: #{tpu_custom_call.1} parent=79 // pred_check_branch
          %1671 = sbr.rel (%p1669) target = $region84
        $region83: #{tpu_custom_call.1} parent=79 // pred_region
          %s1672 = sand.u32 %s314, 1
          %s1673 = scalar_lea.sflag [#allocation3], %s1672
          %s1674 = sand.u32 %s314, 1
          %s1675 = smul.addr %s1674, 8
          %s1676 = scalar_lea.vmem [#allocation2], %s1675
          %1677 = dma.done %s1673, 128
        $region84: #{tpu_custom_call.1} parent=79 // pred_fallthru
          _
      $region80: #{tpu_custom_call.1} parent=5 // pred_fallthru
        _
    $region6: #{tpu_custom_call.1} parent=1 // loop_footer
      %s26 = sadd.s32 1, %s22
    $region7: #{tpu_custom_call.1} parent=1 // loop_footer_branch
      %21 = sbr.rel target = $region3
    $region8: #{tpu_custom_call.1} parent=1 // loop_exit
      _
    %1678 = vsyncpa [#allocation3], 1
    %s1679 = scalar_lea.sflag [#allocation3], 1
    %1680 = vsyncpa %s1679, 1

</llo_original>
